<compile_context>
chip_gen: v5e
topology: v5e:2x2
jax: 0.10.0
libtpu: 0.0.40
codegen_flags: <defaults>
</compile_context>

<pallas_src>
import functools

import jax
import jax.numpy as jnp
from jax.experimental import pallas as pl
from jax.experimental.pallas import tpu as pltpu

EPS = 1e-5  # nn.BatchNorm1d default eps


def _round_up(x, m):
    return ((x + m - 1) // m) * m


# ---------------------------------------------------------------------------
# Kernel 1: fused per-token projections (MEGNN_0.lin_layer, MEGNN_1.lin_layer,
# linears[0]) as a single lane-dense matmul against a block-diagonal weight.
# ---------------------------------------------------------------------------
def _proj_kernel(x_ref, w_ref, b_ref, o_ref):
    o_ref[...] = (
        jnp.dot(x_ref[...], w_ref[...], preferred_element_type=jnp.float32)
        + b_ref[...]
    ).astype(o_ref.dtype)


def _fused_token_projections(query, key, value, wl_q, bl_q, wl_k, bl_k, wv, bv,
                             *, max_tile_rows=512):
    B, S, D = query.shape
    rows = B * S
    out_w = _round_up(3 * D, 128)          # lane-dense (unmasked) output stores

    # Block-diagonal weight / concatenated bias, zero-padded to out_w lanes.
    # (At toy d_model this costs nothing; at large d_model split into 3 matmuls.)
    w_bd = jnp.zeros((3 * D, out_w), jnp.float32)
    w_bd = w_bd.at[0 * D:1 * D, 0 * D:1 * D].set(wl_q)
    w_bd = w_bd.at[1 * D:2 * D, 1 * D:2 * D].set(wl_k)
    w_bd = w_bd.at[2 * D:3 * D, 2 * D:3 * D].set(wv)
    b_bd = jnp.zeros((1, out_w), jnp.float32)
    b_bd = b_bd.at[0, 0 * D:1 * D].set(bl_q)
    b_bd = b_bd.at[0, 1 * D:2 * D].set(bl_k)
    b_bd = b_bd.at[0, 2 * D:3 * D].set(bv)

    x_wide = jnp.concatenate(
        [query.reshape(rows, D), key.reshape(rows, D), value.reshape(rows, D)],
        axis=-1)                                          # (rows, 3D)

    # cdiv tiling with zero padding instead of asserting divisibility.
    tile = min(max_tile_rows, _round_up(rows, 8))
    rows_p = _round_up(rows, tile)
    if rows_p != rows:
        x_wide = jnp.pad(x_wide, ((0, rows_p - rows), (0, 0)))

    out = pl.pallas_call(
        _proj_kernel,
        out_shape=jax.ShapeDtypeStruct((rows_p, out_w), jnp.float32),
        grid_spec=pltpu.PrefetchScalarGridSpec(
            num_scalar_prefetch=0,
            grid=(rows_p // tile,),
            in_specs=[
                pl.BlockSpec((tile, 3 * D), lambda i: (i, 0)),
                pl.BlockSpec((3 * D, out_w), lambda i: (0, 0)),
                pl.BlockSpec((1, out_w), lambda i: (0, 0)),
            ],
            out_specs=pl.BlockSpec((tile, out_w), lambda i: (i, 0)),
        ),
        compiler_params=pltpu.CompilerParams(
            dimension_semantics=("parallel",)),
    )(x_wide, w_bd, b_bd)

    out = out[:rows]
    q1 = out[:, 0 * D:1 * D].reshape(B, S, D)
    k1 = out[:, 1 * D:2 * D].reshape(B, S, D)
    v1 = out[:, 2 * D:3 * D].reshape(B, S, D)
    return q1, k1, v1


# ---------------------------------------------------------------------------
# Kernel 2: MEGNN out_mlp for the query and key clones (grid axis g in {q,k}).
# Linear(S*D->hidden) with eval-mode BatchNorm1d folded in, Dropout=identity,
# ReLU, Linear(hidden->S*D).  Hidden is zero-padded to 128 lanes (exact no-op).
# ---------------------------------------------------------------------------
def _mlp_kernel(x_ref, w1_ref, b1_ref, w2_ref, b2_ref, o_ref):
    h = jnp.dot(x_ref[0], w1_ref[0], preferred_element_type=jnp.float32) + b1_ref[0]
    h = jnp.maximum(h, 0.0)                       # Dropout(eval)=identity, ReLU
    y = jnp.dot(h, w2_ref[0], preferred_element_type=jnp.float32) + b2_ref[0]
    o_ref[0] = y.astype(o_ref.dtype)


def _megnn_mlp_pair(q_flat, k_flat, mlp_q, mlp_k):
    B, F = q_flat.shape

    def fold(p):
        w1, b1, gamma, beta, mean, var, w2, b2 = p
        hidden = w1.shape[1]
        hp = _round_up(hidden, 128)
        # BatchNorm1d (eval) fold: y = s*h + t, s = gamma / sqrt(var + eps).
        s = gamma / jnp.sqrt(var + EPS)
        t = beta - mean * s
        w1f = jnp.pad(w1 * s[None, :], ((0, 0), (0, hp - hidden)))
        b1f = jnp.pad(b1 * s + t, (0, hp - hidden))
        w2p = jnp.pad(w2, ((0, hp - hidden), (0, 0)))
        return w1f, b1f, w2p, b2

    w1q, b1q, w2q, b2q = fold(mlp_q)
    w1k, b1k, w2k, b2k = fold(mlp_k)
    hp = w1q.shape[1]

    x = jnp.stack([q_flat, k_flat])                    # (2, B, F)
    w1 = jnp.stack([w1q, w1k])                         # (2, F, hp)
    b1 = jnp.stack([b1q, b1k])[:, None, :]             # (2, 1, hp)
    w2 = jnp.stack([w2q, w2k])                         # (2, hp, F)
    b2 = jnp.stack([b2q, b2k])[:, None, :]             # (2, 1, F)

    out = pl.pallas_call(
        _mlp_kernel,
        out_shape=jax.ShapeDtypeStruct((2, B, F), jnp.float32),
        grid_spec=pltpu.PrefetchScalarGridSpec(
            num_scalar_prefetch=0,
            grid=(2,),
            in_specs=[
                pl.BlockSpec((1, B, F), lambda g: (g, 0, 0)),
                pl.BlockSpec((1, F, hp), lambda g: (g, 0, 0)),
                pl.BlockSpec((1, 1, hp), lambda g: (g, 0, 0)),
                pl.BlockSpec((1, hp, F), lambda g: (g, 0, 0)),
                pl.BlockSpec((1, 1, F), lambda g: (g, 0, 0)),
            ],
            out_specs=pl.BlockSpec((1, B, F), lambda g: (g, 0, 0)),
        ),
        compiler_params=pltpu.CompilerParams(
            dimension_semantics=("parallel",)),
    )(x, w1, b1, w2, b2)
    return out[0], out[1]


# ---------------------------------------------------------------------------
# Kernel 3: multi-head scaled-dot-product attention + output projection
# (linears[1]).  One grid step per batch element; heads handled as the batch
# dim of batched MXU matmuls; head-concat + Wo folded into per-head matmuls.
# Output projection is padded to 128 lanes (unmasked stores); sliced outside.
# ---------------------------------------------------------------------------
def _attention_kernel(q_ref, k_ref, v_ref, wo_ref, bo_ref, out_ref, attn_ref,
                      *, scale):
    q = q_ref[0] * scale                                # (H, S, dk), pre-scaled
    k = k_ref[0]
    v = v_ref[0]

    scores = jnp.einsum("hqd,hkd->hqk", q, k,
                        preferred_element_type=jnp.float32)
    # TODO(synk): optional attention mask (masked_fill(mask==0, -1e9)) not wired.
    m = jnp.max(scores, axis=-1, keepdims=True)
    e = jnp.exp(scores - m)
    attn = e / jnp.sum(e, axis=-1, keepdims=True)       # softmax over keys
    attn_ref[0] = attn.astype(attn_ref.dtype)           # dropout(eval) = identity

    ctx = jnp.einsum("hqk,hkd->hqd", attn, v,
                     preferred_element_type=jnp.float32)         # (H, S, dk)
    # concat_h(ctx_h) @ Wo  ==  sum_h ctx_h @ Wo[h*dk:(h+1)*dk, :]
    proj = jnp.einsum("hsd,hde->hse", ctx, wo_ref[...],
                      preferred_element_type=jnp.float32)        # (H, S, Dp)
    acc = proj[0]
    for h in range(1, proj.shape[0]):                   # static unroll over heads
        acc = acc + proj[h]
    out_ref[0] = (acc + bo_ref[...]).astype(out_ref.dtype)


def _mha_out_proj(q, k, v, wo, bo):
    B, H, S, dk = q.shape
    D = H * dk
    Dp = _round_up(D, 128)                              # lane-dense output stores
    wo_p = jnp.pad(wo, ((0, 0), (0, Dp - D))).reshape(H, dk, Dp)
    bo_p = jnp.pad(bo, (0, Dp - D)).reshape(1, Dp)
    kernel = functools.partial(_attention_kernel, scale=float(dk) ** -0.5)
    out_p, attn = pl.pallas_call(
        kernel,
        out_shape=(jax.ShapeDtypeStruct((B, S, Dp), jnp.float32),
                   jax.ShapeDtypeStruct((B, H, S, S), jnp.float32)),
        grid_spec=pltpu.PrefetchScalarGridSpec(
            num_scalar_prefetch=0,
            grid=(B,),
            in_specs=[
                pl.BlockSpec((1, H, S, dk), lambda b: (b, 0, 0, 0)),
                pl.BlockSpec((1, H, S, dk), lambda b: (b, 0, 0, 0)),
                pl.BlockSpec((1, H, S, dk), lambda b: (b, 0, 0, 0)),
                pl.BlockSpec((H, dk, Dp), lambda b: (0, 0, 0)),
                pl.BlockSpec((1, Dp), lambda b: (0, 0)),
            ],
            out_specs=(
                pl.BlockSpec((1, S, Dp), lambda b: (b, 0, 0)),
                pl.BlockSpec((1, H, S, S), lambda b: (b, 0, 0, 0)),
            ),
        ),
        compiler_params=pltpu.CompilerParams(
            dimension_semantics=("parallel",)),
    )(q, k, v, wo_p, bo_p)
    return out_p[:, :, :D], attn


# ---------------------------------------------------------------------------
# Full pathAttention forward (eval mode, mask=None).
# ---------------------------------------------------------------------------
def path_attention_forward(query, key, value, params, *, n_head):
    B, S, D = query.shape
    dk = D // n_head
    wl_q, bl_q, mlp_q, wl_k, bl_k, mlp_k, wv, bv, wo, bo = params

    # Stage 1: per-token linears (two MEGNN.lin_layer + linears[0]), fused.
    q1, k1, v1 = _fused_token_projections(query, key, value,
                                          wl_q, bl_q, wl_k, bl_k, wv, bv)

    # Stage 2: MEGNN out_mlp (+ folded eval BatchNorm) on flattened (B, S*D).
    q2f, k2f = _megnn_mlp_pair(q1.reshape(B, S * D), k1.reshape(B, S * D),
                               mlp_q, mlp_k)

    # Head split = layout plumbing done at trace time in the wrapper.
    def heads(x):
        return x.reshape(B, S, n_head, dk).transpose(0, 2, 1, 3)

    qh = heads(q2f)
    kh = heads(k2f)
    vh = heads(v1.reshape(B, S * D))

    # Stage 3: attention + output projection.
    return _mha_out_proj(qh, kh, vh, wo, bo)


# ---------------------------------------------------------------------------
# Pure-JAX reference (literal, unfolded) for correctness checking.
# ---------------------------------------------------------------------------
def path_attention_reference(query, key, value, params, *, n_head):
    B, S, D = query.shape
    dk = D // n_head
    wl_q, bl_q, mlp_q, wl_k, bl_k, mlp_k, wv, bv, wo, bo = params

    def megnn(x, wl, bl, mlp):
        w1, b1, gamma, beta, mean, var, w2, b2 = mlp
        x1 = x @ wl + bl
        x2 = x1.reshape(B, S * D)
        h = x2 @ w1 + b1
        h = (h - mean) / jnp.sqrt(var + EPS) * gamma + beta
        h = jnp.maximum(h, 0.0)
        return (h @ w2 + b2).reshape(B, S, D)

    q = megnn(query, wl_q, bl_q, mlp_q)
    k = megnn(key, wl_k, bl_k, mlp_k)
    v = value @ wv + bv

    def heads(x):
        return x.reshape(B, S, n_head, dk).transpose(0, 2, 1, 3)

    qh, kh, vh = heads(q), heads(k), heads(v)
    scores = jnp.einsum("bhqd,bhkd->bhqk", qh, kh) / jnp.sqrt(jnp.float32(dk))
    attn = jax.nn.softmax(scores, axis=-1)
    ctx = jnp.einsum("bhqk,bhkd->bhqd", attn, vh)
    ctx = ctx.transpose(0, 2, 1, 3).reshape(B, S, D)
    return ctx @ wo + bo, attn


if __name__ == "__main__":
    # Small shapes consistent with the module: seq length == Nnodes.
    B, S, D, H, hidden = 2, 16, 32, 4, 64          # Nnodes=16, d_model=32, n_head=4

    key0 = jax.random.PRNGKey(0)
    ks = iter(jax.random.split(key0, 32))
    nrm = lambda shape, scale=0.1: scale * jax.random.normal(next(ks), shape, jnp.float32)

    query = jax.random.normal(next(ks), (B, S, D), jnp.float32)
    key_t = jax.random.normal(next(ks), (B, S, D), jnp.float32)
    value = jax.random.normal(next(ks), (B, S, D), jnp.float32)

    def make_mlp():
        w1 = nrm((S * D, hidden))          # out_mlp[0] weight (pre-transposed)
        b1 = nrm((hidden,))
        gamma = 1.0 + nrm((hidden,))       # BatchNorm1d affine + running stats
        beta = nrm((hidden,))
        mean = nrm((hidden,))
        var = jnp.abs(jax.random.normal(next(ks), (hidden,), jnp.float32)) + 0.5
        w2 = nrm((hidden, S * D))          # out_mlp[-1] weight (pre-transposed)
        b2 = nrm((S * D,))
        return (w1, b1, gamma, beta, mean, var, w2, b2)

    params = (
        nrm((D, D)), nrm((D,)), make_mlp(),   # MEGNN clone 0 (query path)
        nrm((D, D)), nrm((D,)), make_mlp(),   # MEGNN clone 1 (key path)
        nrm((D, D)), nrm((D,)),               # linears[0] (value projection)
        nrm((D, D)), nrm((D,)),               # linears[1] (output projection)
    )

    fwd = jax.jit(functools.partial(path_attention_forward, n_head=H))
    out, attn = fwd(query, key_t, value, params)
    out = jax.block_until_ready(out)
    attn = jax.block_until_ready(attn)

    out_ref, attn_ref = path_attention_reference(query, key_t, value, params, n_head=H)
    assert jnp.allclose(out, out_ref, atol=1e-3, rtol=1e-3), "output mismatch vs reference"
    assert jnp.allclose(attn, attn_ref, atol=1e-3, rtol=1e-3), "attn mismatch vs reference"

    print("KERNEL_OK")
</pallas_src>

<mosaic_0001>
module attributes {stable_mosaic.version = 11 : i64} {
  func.func @_proj_kernel(%arg0: i32, %arg1: memref<32x96xf32, #tpu.memory_space<vmem>>, %arg2: memref<96x128xf32, #tpu.memory_space<vmem>>, %arg3: memref<1x128xf32, #tpu.memory_space<vmem>>, %arg4: memref<32x128xf32, #tpu.memory_space<vmem>>) attributes {dimension_semantics = [#tpu.dimension_semantics<parallel>], iteration_bounds = array<i64: 1>, scalar_prefetch = 0 : i64, scratch_operands = 0 : i64, tpu.core_type = #tpu.core_type<tc>, window_params = [{transform_indices = @transform_0, window_bounds = array<i64: 32, 96>}, {pipeline_mode = #tpu.pipeline_mode<synchronous>, transform_indices = @transform_1, window_bounds = array<i64: 96, 128>}, {pipeline_mode = #tpu.pipeline_mode<synchronous>, transform_indices = @transform_2, window_bounds = array<i64: 1, 128>}, {transform_indices = @transform_3, window_bounds = array<i64: 32, 128>}]} {
    %c0 = arith.constant 0 : index
    %c0_0 = arith.constant 0 : index
    %0 = vector.load %arg1[%c0, %c0_0] : memref<32x96xf32, #tpu.memory_space<vmem>>, vector<32x96xf32>
    %c0_1 = arith.constant 0 : index
    %c0_2 = arith.constant 0 : index
    %1 = vector.load %arg2[%c0_1, %c0_2] : memref<96x128xf32, #tpu.memory_space<vmem>>, vector<96x128xf32>
    %cst = arith.constant dense<0.000000e+00> : vector<32x128xf32>
    %2 = tpu.matmul %0, %1, %cst {dimension_numbers = #tpu.dot_dimension_numbers<[1], [0], [0], [1], [0, 0, 1, 1], [], []>} : vector<32x96xf32>, vector<96x128xf32>, vector<32x128xf32> -> vector<32x128xf32>
    %c0_3 = arith.constant 0 : index
    %c0_4 = arith.constant 0 : index
    %3 = vector.load %arg3[%c0_3, %c0_4] : memref<1x128xf32, #tpu.memory_space<vmem>>, vector<1x128xf32>
    %4 = vector.broadcast %3 : vector<1x128xf32> to vector<32x128xf32>
    %5 = arith.addf %2, %4 : vector<32x128xf32>
    %c0_5 = arith.constant 0 : index
    %c0_6 = arith.constant 0 : index
    %6 = vector.load %arg4[%c0_5, %c0_6] : memref<32x128xf32, #tpu.memory_space<vmem>>, vector<32x128xf32>
    tpu.vector_store %arg4[%c0_5, %c0_6], %5 {strides = array<i32>} : memref<32x128xf32, #tpu.memory_space<vmem>>, vector<32x128xf32>,
    return
  }
  func.func @transform_0(%arg0: i32) -> (i32, i32) {
    %c0_i32 = arith.constant 0 : i32
    %c0_i32_0 = arith.constant 0 : i32
    return %arg0, %c0_i32 : i32, i32
  }
  func.func @transform_1(%arg0: i32) -> (i32, i32) {
    %c0_i32 = arith.constant 0 : i32
    %c0_i32_0 = arith.constant 0 : i32
    %c0_i32_1 = arith.constant 0 : i32
    return %c0_i32, %c0_i32_0 : i32, i32
  }
  func.func @transform_2(%arg0: i32) -> (i32, i32) {
    %c0_i32 = arith.constant 0 : i32
    %c0_i32_0 = arith.constant 0 : i32
    %c0_i32_1 = arith.constant 0 : i32
    return %c0_i32, %c0_i32_0 : i32, i32
  }
  func.func @transform_3(%arg0: i32) -> (i32, i32) {
    %c0_i32 = arith.constant 0 : i32
    %c0_i32_0 = arith.constant 0 : i32
    return %arg0, %c0_i32 : i32, i32
  }
}

module attributes {stable_mosaic.version = 11 : i64} {
  func.func @_mlp_kernel(%arg0: i32, %arg1: memref<1x2x512xf32, #tpu.memory_space<vmem>>, %arg2: memref<1x512x128xf32, #tpu.memory_space<vmem>>, %arg3: memref<1x1x128xf32, #tpu.memory_space<vmem>>, %arg4: memref<1x128x512xf32, #tpu.memory_space<vmem>>, %arg5: memref<1x1x512xf32, #tpu.memory_space<vmem>>, %arg6: memref<1x2x512xf32, #tpu.memory_space<vmem>>) attributes {dimension_semantics = [#tpu.dimension_semantics<parallel>], iteration_bounds = array<i64: 2>, scalar_prefetch = 0 : i64, scratch_operands = 0 : i64, tpu.core_type = #tpu.core_type<tc>, window_params = [{transform_indices = @transform_0, window_bounds = array<i64: 1, 2, 512>}, {transform_indices = @transform_1, window_bounds = array<i64: 1, 512, 128>}, {transform_indices = @transform_2, window_bounds = array<i64: 1, 1, 128>}, {transform_indices = @transform_3, window_bounds = array<i64: 1, 128, 512>}, {transform_indices = @transform_4, window_bounds = array<i64: 1, 1, 512>}, {transform_indices = @transform_5, window_bounds = array<i64: 1, 2, 512>}]} {
    %c0 = arith.constant 0 : index
    %c0_0 = arith.constant 0 : index
    %c0_1 = arith.constant 0 : index
    %0 = vector.load %arg1[%c0, %c0_0, %c0_1] : memref<1x2x512xf32, #tpu.memory_space<vmem>>, vector<1x2x512xf32>
    %1 = vector.shape_cast %0 : vector<1x2x512xf32> to vector<2x512xf32>
    %c0_2 = arith.constant 0 : index
    %c0_3 = arith.constant 0 : index
    %c0_4 = arith.constant 0 : index
    %2 = vector.load %arg2[%c0_2, %c0_3, %c0_4] : memref<1x512x128xf32, #tpu.memory_space<vmem>>, vector<1x512x128xf32>
    %3 = vector.shape_cast %2 : vector<1x512x128xf32> to vector<512x128xf32>
    %cst = arith.constant dense<0.000000e+00> : vector<2x128xf32>
    %4 = tpu.matmul %1, %3, %cst {dimension_numbers = #tpu.dot_dimension_numbers<[1], [0], [0], [1], [0, 0, 1, 1], [], []>} : vector<2x512xf32>, vector<512x128xf32>, vector<2x128xf32> -> vector<2x128xf32>
    %c0_5 = arith.constant 0 : index
    %c0_6 = arith.constant 0 : index
    %c0_7 = arith.constant 0 : index
    %5 = vector.load %arg3[%c0_5, %c0_6, %c0_7] : memref<1x1x128xf32, #tpu.memory_space<vmem>>, vector<1x1x128xf32>
    %6 = vector.shape_cast %5 : vector<1x1x128xf32> to vector<1x128xf32>
    %7 = vector.broadcast %6 : vector<1x128xf32> to vector<2x128xf32>
    %8 = arith.addf %4, %7 : vector<2x128xf32>
    %cst_8 = arith.constant 0.000000e+00 : f32
    %9 = vector.broadcast %cst_8 : f32 to vector<2x128xf32>
    %10 = arith.maximumf %8, %9 : vector<2x128xf32>
    %c0_9 = arith.constant 0 : index
    %c0_10 = arith.constant 0 : index
    %c0_11 = arith.constant 0 : index
    %11 = vector.load %arg4[%c0_9, %c0_10, %c0_11] : memref<1x128x512xf32, #tpu.memory_space<vmem>>, vector<1x128x512xf32>
    %12 = vector.shape_cast %11 : vector<1x128x512xf32> to vector<128x512xf32>
    %cst_12 = arith.constant dense<0.000000e+00> : vector<2x512xf32>
    %13 = tpu.matmul %10, %12, %cst_12 {dimension_numbers = #tpu.dot_dimension_numbers<[1], [0], [0], [1], [0, 0, 1, 1], [], []>} : vector<2x128xf32>, vector<128x512xf32>, vector<2x512xf32> -> vector<2x512xf32>
    %c0_13 = arith.constant 0 : index
    %c0_14 = arith.constant 0 : index
    %c0_15 = arith.constant 0 : index
    %14 = vector.load %arg5[%c0_13, %c0_14, %c0_15] : memref<1x1x512xf32, #tpu.memory_space<vmem>>, vector<1x1x512xf32>
    %15 = vector.shape_cast %14 : vector<1x1x512xf32> to vector<1x512xf32>
    %16 = vector.broadcast %15 : vector<1x512xf32> to vector<2x512xf32>
    %17 = arith.addf %13, %16 : vector<2x512xf32>
    %c0_16 = arith.constant 0 : index
    %c0_17 = arith.constant 0 : index
    %c0_18 = arith.constant 0 : index
    %18 = vector.load %arg6[%c0_16, %c0_17, %c0_18] : memref<1x2x512xf32, #tpu.memory_space<vmem>>, vector<1x2x512xf32>
    %19 = vector.shape_cast %18 : vector<1x2x512xf32> to vector<2x512xf32>
    %20 = vector.shape_cast %17 : vector<2x512xf32> to vector<1x2x512xf32>
    tpu.vector_store %arg6[%c0_16, %c0_17, %c0_18], %20 {strides = array<i32>} : memref<1x2x512xf32, #tpu.memory_space<vmem>>, vector<1x2x512xf32>,
    return
  }
  func.func @transform_0(%arg0: i32) -> (i32, i32, i32) {
    %c0_i32 = arith.constant 0 : i32
    %c0_i32_0 = arith.constant 0 : i32
    %c0_i32_1 = arith.constant 0 : i32
    return %arg0, %c0_i32, %c0_i32_0 : i32, i32, i32
  }
  func.func @transform_1(%arg0: i32) -> (i32, i32, i32) {
    %c0_i32 = arith.constant 0 : i32
    %c0_i32_0 = arith.constant 0 : i32
    %c0_i32_1 = arith.constant 0 : i32
    return %arg0, %c0_i32, %c0_i32_0 : i32, i32, i32
  }
  func.func @transform_2(%arg0: i32) -> (i32, i32, i32) {
    %c0_i32 = arith.constant 0 : i32
    %c0_i32_0 = arith.constant 0 : i32
    %c0_i32_1 = arith.constant 0 : i32
    return %arg0, %c0_i32, %c0_i32_0 : i32, i32, i32
  }
  func.func @transform_3(%arg0: i32) -> (i32, i32, i32) {
    %c0_i32 = arith.constant 0 : i32
    %c0_i32_0 = arith.constant 0 : i32
    %c0_i32_1 = arith.constant 0 : i32
    return %arg0, %c0_i32, %c0_i32_0 : i32, i32, i32
  }
  func.func @transform_4(%arg0: i32) -> (i32, i32, i32) {
    %c0_i32 = arith.constant 0 : i32
    %c0_i32_0 = arith.constant 0 : i32
    %c0_i32_1 = arith.constant 0 : i32
    return %arg0, %c0_i32, %c0_i32_0 : i32, i32, i32
  }
  func.func @transform_5(%arg0: i32) -> (i32, i32, i32) {
    %c0_i32 = arith.constant 0 : i32
    %c0_i32_0 = arith.constant 0 : i32
    %c0_i32_1 = arith.constant 0 : i32
    return %arg0, %c0_i32, %c0_i32_0 : i32, i32, i32
  }
}

module attributes {stable_mosaic.version = 11 : i64} {
  func.func @_attention_kernel(%arg0: i32, %arg1: memref<1x4x16x8xf32, #tpu.memory_space<vmem>>, %arg2: memref<1x4x16x8xf32, #tpu.memory_space<vmem>>, %arg3: memref<1x4x16x8xf32, #tpu.memory_space<vmem>>, %arg4: memref<4x8x128xf32, #tpu.memory_space<vmem>>, %arg5: memref<1x128xf32, #tpu.memory_space<vmem>>, %arg6: memref<1x16x128xf32, #tpu.memory_space<vmem>>, %arg7: memref<1x4x16x16xf32, #tpu.memory_space<vmem>>) attributes {dimension_semantics = [#tpu.dimension_semantics<parallel>], iteration_bounds = array<i64: 2>, scalar_prefetch = 0 : i64, scratch_operands = 0 : i64, tpu.core_type = #tpu.core_type<tc>, window_params = [{transform_indices = @transform_0, window_bounds = array<i64: 1, 4, 16, 8>}, {transform_indices = @transform_1, window_bounds = array<i64: 1, 4, 16, 8>}, {transform_indices = @transform_2, window_bounds = array<i64: 1, 4, 16, 8>}, {pipeline_mode = #tpu.pipeline_mode<synchronous>, transform_indices = @transform_3, window_bounds = array<i64: 4, 8, 128>}, {pipeline_mode = #tpu.pipeline_mode<synchronous>, transform_indices = @transform_4, window_bounds = array<i64: 1, 128>}, {transform_indices = @transform_5, window_bounds = array<i64: 1, 16, 128>}, {transform_indices = @transform_6, window_bounds = array<i64: 1, 4, 16, 16>}]} {
    %c0 = arith.constant 0 : index
    %c0_0 = arith.constant 0 : index
    %c0_1 = arith.constant 0 : index
    %c0_2 = arith.constant 0 : index
    %0 = vector.load %arg1[%c0, %c0_0, %c0_1, %c0_2] : memref<1x4x16x8xf32, #tpu.memory_space<vmem>>, vector<1x4x16x8xf32>
    %1 = vector.shape_cast %0 : vector<1x4x16x8xf32> to vector<4x16x8xf32>
    %cst = arith.constant 0.353553385 : f32
    %2 = vector.broadcast %cst : f32 to vector<4x16x8xf32>
    %3 = arith.mulf %1, %2 : vector<4x16x8xf32>
    %c0_3 = arith.constant 0 : index
    %c0_4 = arith.constant 0 : index
    %c0_5 = arith.constant 0 : index
    %c0_6 = arith.constant 0 : index
    %4 = vector.load %arg2[%c0_3, %c0_4, %c0_5, %c0_6] : memref<1x4x16x8xf32, #tpu.memory_space<vmem>>, vector<1x4x16x8xf32>
    %5 = vector.shape_cast %4 : vector<1x4x16x8xf32> to vector<4x16x8xf32>
    %c0_7 = arith.constant 0 : index
    %c0_8 = arith.constant 0 : index
    %c0_9 = arith.constant 0 : index
    %c0_10 = arith.constant 0 : index
    %6 = vector.load %arg3[%c0_7, %c0_8, %c0_9, %c0_10] : memref<1x4x16x8xf32, #tpu.memory_space<vmem>>, vector<1x4x16x8xf32>
    %7 = vector.shape_cast %6 : vector<1x4x16x8xf32> to vector<4x16x8xf32>
    "tpu.trace_start"() <{level = 10 : i32, message = "hqd,hkd->hqk"}> : () -> ()
    %cst_11 = arith.constant dense<0.000000e+00> : vector<4x16x16xf32>
    %8 = tpu.matmul %3, %5, %cst_11 {dimension_numbers = #tpu.dot_dimension_numbers<[2], [2], [1], [1], [0, 0, 0, 1, 1, 1], [0], [0]>} : vector<4x16x8xf32>, vector<4x16x8xf32>, vector<4x16x16xf32> -> vector<4x16x16xf32>
    "tpu.trace_stop"() : () -> ()
    %cst_12 = arith.constant dense<0xFF800000> : vector<4x16xf32>
    %9 = vector.multi_reduction <maximumf>, %8, %cst_12 [2] : vector<4x16x16xf32> to vector<4x16xf32>
    %10 = vector.shape_cast %9 : vector<4x16xf32> to vector<4x16x1xf32>
    %11 = vector.broadcast %10 : vector<4x16x1xf32> to vector<4x16x16xf32>
    %12 = arith.subf %8, %11 : vector<4x16x16xf32>
    %13 = math.exp %12 : vector<4x16x16xf32>
    %cst_13 = arith.constant dense<0.000000e+00> : vector<4x16xf32>
    %14 = vector.multi_reduction <add>, %13, %cst_13 [2] : vector<4x16x16xf32> to vector<4x16xf32>
    %15 = vector.shape_cast %14 : vector<4x16xf32> to vector<4x16x1xf32>
    %16 = vector.broadcast %15 : vector<4x16x1xf32> to vector<4x16x16xf32>
    %17 = arith.divf %13, %16 : vector<4x16x16xf32>
    %c0_14 = arith.constant 0 : index
    %c0_15 = arith.constant 0 : index
    %c0_16 = arith.constant 0 : index
    %c0_17 = arith.constant 0 : index
    %18 = vector.load %arg7[%c0_14, %c0_15, %c0_16, %c0_17] : memref<1x4x16x16xf32, #tpu.memory_space<vmem>>, vector<1x4x16x16xf32>
    %19 = vector.shape_cast %18 : vector<1x4x16x16xf32> to vector<4x16x16xf32>
    %20 = vector.shape_cast %17 : vector<4x16x16xf32> to vector<1x4x16x16xf32>
    tpu.vector_store %arg7[%c0_14, %c0_15, %c0_16, %c0_17], %20 {strides = array<i32>} : memref<1x4x16x16xf32, #tpu.memory_space<vmem>>, vector<1x4x16x16xf32>,
    "tpu.trace_start"() <{level = 10 : i32, message = "hqk,hkd->hqd"}> : () -> ()
    %cst_18 = arith.constant dense<0.000000e+00> : vector<4x16x8xf32>
    %21 = tpu.matmul %17, %7, %cst_18 {dimension_numbers = #tpu.dot_dimension_numbers<[2], [1], [1], [2], [0, 0, 0, 1, 1, 2], [0], [0]>} : vector<4x16x16xf32>, vector<4x16x8xf32>, vector<4x16x8xf32> -> vector<4x16x8xf32>
    "tpu.trace_stop"() : () -> ()
    %c0_19 = arith.constant 0 : index
    %c0_20 = arith.constant 0 : index
    %c0_21 = arith.constant 0 : index
    %22 = vector.load %arg4[%c0_19, %c0_20, %c0_21] : memref<4x8x128xf32, #tpu.memory_space<vmem>>, vector<4x8x128xf32>
    "tpu.trace_start"() <{level = 10 : i32, message = "hsd,hde->hse"}> : () -> ()
    %cst_22 = arith.constant dense<0.000000e+00> : vector<4x16x128xf32>
    %23 = tpu.matmul %21, %22, %cst_22 {dimension_numbers = #tpu.dot_dimension_numbers<[2], [1], [1], [2], [0, 0, 0, 1, 1, 2], [0], [0]>} : vector<4x16x8xf32>, vector<4x8x128xf32>, vector<4x16x128xf32> -> vector<4x16x128xf32>
    "tpu.trace_stop"() : () -> ()
    %24 = vector.extract_strided_slice %23 {offsets = [0, 0, 0], sizes = [1, 16, 128], strides = [1, 1, 1]} : vector<4x16x128xf32> to vector<1x16x128xf32>
    %25 = vector.shape_cast %24 : vector<1x16x128xf32> to vector<16x128xf32>
    %26 = vector.extract_strided_slice %23 {offsets = [1, 0, 0], sizes = [1, 16, 128], strides = [1, 1, 1]} : vector<4x16x128xf32> to vector<1x16x128xf32>
    %27 = vector.shape_cast %26 : vector<1x16x128xf32> to vector<16x128xf32>
    %28 = arith.addf %25, %27 : vector<16x128xf32>
    %29 = vector.extract_strided_slice %23 {offsets = [2, 0, 0], sizes = [1, 16, 128], strides = [1, 1, 1]} : vector<4x16x128xf32> to vector<1x16x128xf32>
    %30 = vector.shape_cast %29 : vector<1x16x128xf32> to vector<16x128xf32>
    %31 = arith.addf %28, %30 : vector<16x128xf32>
    %32 = vector.extract_strided_slice %23 {offsets = [3, 0, 0], sizes = [1, 16, 128], strides = [1, 1, 1]} : vector<4x16x128xf32> to vector<1x16x128xf32>
    %33 = vector.shape_cast %32 : vector<1x16x128xf32> to vector<16x128xf32>
    %34 = arith.addf %31, %33 : vector<16x128xf32>
    %c0_23 = arith.constant 0 : index
    %c0_24 = arith.constant 0 : index
    %35 = vector.load %arg5[%c0_23, %c0_24] : memref<1x128xf32, #tpu.memory_space<vmem>>, vector<1x128xf32>
    %36 = vector.broadcast %35 : vector<1x128xf32> to vector<16x128xf32>
    %37 = arith.addf %34, %36 : vector<16x128xf32>
    %c0_25 = arith.constant 0 : index
    %c0_26 = arith.constant 0 : index
    %c0_27 = arith.constant 0 : index
    %38 = vector.load %arg6[%c0_25, %c0_26, %c0_27] : memref<1x16x128xf32, #tpu.memory_space<vmem>>, vector<1x16x128xf32>
    %39 = vector.shape_cast %38 : vector<1x16x128xf32> to vector<16x128xf32>
    %40 = vector.shape_cast %37 : vector<16x128xf32> to vector<1x16x128xf32>
    tpu.vector_store %arg6[%c0_25, %c0_26, %c0_27], %40 {strides = array<i32>} : memref<1x16x128xf32, #tpu.memory_space<vmem>>, vector<1x16x128xf32>,
    return
  }
  func.func @transform_0(%arg0: i32) -> (i32, i32, i32, i32) {
    %c0_i32 = arith.constant 0 : i32
    %c0_i32_0 = arith.constant 0 : i32
    %c0_i32_1 = arith.constant 0 : i32
    %c0_i32_2 = arith.constant 0 : i32
    return %arg0, %c0_i32, %c0_i32_0, %c0_i32_1 : i32, i32, i32, i32
  }
  func.func @transform_1(%arg0: i32) -> (i32, i32, i32, i32) {
    %c0_i32 = arith.constant 0 : i32
    %c0_i32_0 = arith.constant 0 : i32
    %c0_i32_1 = arith.constant 0 : i32
    %c0_i32_2 = arith.constant 0 : i32
    return %arg0, %c0_i32, %c0_i32_0, %c0_i32_1 : i32, i32, i32, i32
  }
  func.func @transform_2(%arg0: i32) -> (i32, i32, i32, i32) {
    %c0_i32 = arith.constant 0 : i32
    %c0_i32_0 = arith.constant 0 : i32
    %c0_i32_1 = arith.constant 0 : i32
    %c0_i32_2 = arith.constant 0 : i32
    return %arg0, %c0_i32, %c0_i32_0, %c0_i32_1 : i32, i32, i32, i32
  }
  func.func @transform_3(%arg0: i32) -> (i32, i32, i32) {
    %c0_i32 = arith.constant 0 : i32
    %c0_i32_0 = arith.constant 0 : i32
    %c0_i32_1 = arith.constant 0 : i32
    %c0_i32_2 = arith.constant 0 : i32
    return %c0_i32, %c0_i32_0, %c0_i32_1 : i32, i32, i32
  }
  func.func @transform_4(%arg0: i32) -> (i32, i32) {
    %c0_i32 = arith.constant 0 : i32
    %c0_i32_0 = arith.constant 0 : i32
    %c0_i32_1 = arith.constant 0 : i32
    return %c0_i32, %c0_i32_0 : i32, i32
  }
  func.func @transform_5(%arg0: i32) -> (i32, i32, i32) {
    %c0_i32 = arith.constant 0 : i32
    %c0_i32_0 = arith.constant 0 : i32
    %c0_i32_1 = arith.constant 0 : i32
    return %arg0, %c0_i32, %c0_i32_0 : i32, i32, i32
  }
  func.func @transform_6(%arg0: i32) -> (i32, i32, i32, i32) {
    %c0_i32 = arith.constant 0 : i32
    %c0_i32_0 = arith.constant 0 : i32
    %c0_i32_1 = arith.constant 0 : i32
    %c0_i32_2 = arith.constant 0 : i32
    return %arg0, %c0_i32, %c0_i32_0, %c0_i32_1 : i32, i32, i32, i32
  }
}

</mosaic_0001>

<llo_original>
// kernel: squeeze.3
$region0: #{squeeze.3}
  %s0 = inlined_call_operand.vmem [shape: f32[1,2,512], index: 0, kind: input, shape index: {}]
  %s1 = inlined_call_operand.vmem [shape: f32[2,16,4,8], index: 1, kind: output, shape index: {}]
  $region1: #{squeeze.3} parent=0
    #allocation0 [shape = 'u8[131072]{0}', space=vmem, size = 0x20000, scoped, tag = 'scoped mem for output reshape']
    #allocation1 [shape = 'u8[16384]{0}', space=vmem, size = 0x4000, scoped, tag = 'scoped mem for input reshape']
    %s3 = ssub.s32 4, 1
    %s4 = scalar_lea.vmem %s0, 6
    %v5 = vld [vmem:[%s4] sm:%s3]
    %s6 = scalar_lea.vmem [#allocation1], 24
    %7 = vst [vmem:[%s6] sm:%s3] %v5
    %s8 = scalar_lea.vmem %s0, 4
    %v9 = vld [vmem:[%s8] sm:%s3]
    %s10 = scalar_lea.vmem [#allocation1], 16
    %11 = vst [vmem:[%s10] sm:%s3] %v9
    %s12 = scalar_lea.vmem %s0, 2
    %v13 = vld [vmem:[%s12] sm:%s3]
    %s14 = scalar_lea.vmem [#allocation1], 8
    %15 = vst [vmem:[%s14] sm:%s3] %v13
    %v16 = vld [vmem:[%s0] sm:%s3]
    %17 = vst [vmem:[#allocation1] sm:%s3] %v16
    %v18 = vld [vmem:[#allocation1] sm:$0x3]
    %vm19 = vcmask 64512
    %20 = vst.msk [vmem:[#allocation0] sm:$0x1] %vm19, %v18
    %s21 = scalar_lea.vmem [#allocation0], 127
    %22 = vst.msk [vmem:[%s21] sm:$0x2] %vm19, %v18
    %s23 = scalar_lea.vmem [#allocation1], 8
    %v24 = vld [vmem:[%s23] sm:$0x3]
    %vm25 = vcmask 64512
    %s26 = scalar_lea.vmem [#allocation0], 32
    %27 = vst.msk [vmem:[%s26] sm:$0x1] %vm25, %v24
    %s28 = scalar_lea.vmem [#allocation0], 159
    %29 = vst.msk [vmem:[%s28] sm:$0x2] %vm25, %v24
    %s30 = scalar_lea.vmem [#allocation1], 16
    %v31 = vld [vmem:[%s30] sm:$0x3]
    %vm32 = vcmask 64512
    %s33 = scalar_lea.vmem [#allocation0], 64
    %34 = vst.msk [vmem:[%s33] sm:$0x1] %vm32, %v31
    %s35 = scalar_lea.vmem [#allocation0], 191
    %36 = vst.msk [vmem:[%s35] sm:$0x2] %vm32, %v31
    %s37 = scalar_lea.vmem [#allocation1], 24
    %v38 = vld [vmem:[%s37] sm:$0x3]
    %vm39 = vcmask 64512
    %s40 = scalar_lea.vmem [#allocation0], 96
    %41 = vst.msk [vmem:[%s40] sm:$0x1] %vm39, %v38
    %s42 = scalar_lea.vmem [#allocation0], 223
    %43 = vst.msk [vmem:[%s42] sm:$0x2] %vm39, %v38
    %v44 = vld.sshfl [vmem:[#allocation1] sm:$0xff pattern:$0x99999810]
    %s45 = scalar_lea.vmem [#allocation1], 16
    %v46 = vld.sshfl [vmem:[%s45] sm:$0xff pattern:$0x98100000]
    %vm47 = vcmask 1047556
    %v48 = vsel %vm47, %v46, %v44
    %49 = vrot.lane.b32.xlu0 %v48, 120
    %v50 = vpop.permute.xlu0 %49
    %vm51 = vcmask 64512
    %s52 = scalar_lea.vmem [#allocation0], 1
    %53 = vst.msk [vmem:[%s52] sm:$0x1] %vm51, %v50
    %s54 = scalar_lea.vmem [#allocation0], 128
    %55 = vst.msk [vmem:[%s54] sm:$0x2] %vm51, %v50
    %s56 = scalar_lea.vmem [#allocation0], 31
    %57 = vst.msk [vmem:[%s56] sm:$0x4] %vm51, %v50
    %s58 = scalar_lea.vmem [#allocation0], 158
    %59 = vst.msk [vmem:[%s58] sm:$0x8] %vm51, %v50
    %s60 = scalar_lea.vmem [#allocation0], 61
    %61 = vst.msk [vmem:[%s60] sm:$0x10] %vm51, %v50
    %s62 = scalar_lea.vmem [#allocation0], 188
    %63 = vst.msk [vmem:[%s62] sm:$0x20] %vm51, %v50
    %s64 = scalar_lea.vmem [#allocation0], 91
    %65 = vst.msk [vmem:[%s64] sm:$0x40] %vm51, %v50
    %s66 = scalar_lea.vmem [#allocation0], 218
    %67 = vst.msk [vmem:[%s66] sm:$0x80] %vm51, %v50
    %v68 = vld.sshfl [vmem:[#allocation1] sm:$0xff pattern:$0x99999810]
    %s69 = scalar_lea.vmem [#allocation1], 16
    %v70 = vld.sshfl [vmem:[%s69] sm:$0xff pattern:$0x98100000]
    %vm71 = vcmask 1047556
    %v72 = vsel %vm71, %v70, %v68
    %73 = vrot.lane.b32.xlu0 %v72, 112
    %v74 = vpop.permute.xlu0 %73
    %vm75 = vcmask 64512
    %s76 = scalar_lea.vmem [#allocation0], 2
    %77 = vst.msk [vmem:[%s76] sm:$0x1] %vm75, %v74
    %s78 = scalar_lea.vmem [#allocation0], 129
    %79 = vst.msk [vmem:[%s78] sm:$0x2] %vm75, %v74
    %s80 = scalar_lea.vmem [#allocation0], 32
    %81 = vst.msk [vmem:[%s80] sm:$0x4] %vm75, %v74
    %s82 = scalar_lea.vmem [#allocation0], 159
    %83 = vst.msk [vmem:[%s82] sm:$0x8] %vm75, %v74
    %s84 = scalar_lea.vmem [#allocation0], 62
    %85 = vst.msk [vmem:[%s84] sm:$0x10] %vm75, %v74
    %s86 = scalar_lea.vmem [#allocation0], 189
    %87 = vst.msk [vmem:[%s86] sm:$0x20] %vm75, %v74
    %s88 = scalar_lea.vmem [#allocation0], 92
    %89 = vst.msk [vmem:[%s88] sm:$0x40] %vm75, %v74
    %s90 = scalar_lea.vmem [#allocation0], 219
    %91 = vst.msk [vmem:[%s90] sm:$0x80] %vm75, %v74
    %v92 = vld.sshfl [vmem:[#allocation1] sm:$0xff pattern:$0x99999810]
    %s93 = scalar_lea.vmem [#allocation1], 16
    %v94 = vld.sshfl [vmem:[%s93] sm:$0xff pattern:$0x98100000]
    %vm95 = vcmask 1047556
    %v96 = vsel %vm95, %v94, %v92
    %97 = vrot.lane.b32.xlu0 %v96, 104
    %v98 = vpop.permute.xlu0 %97
    %vm99 = vcmask 64512
    %s100 = scalar_lea.vmem [#allocation0], 3
    %101 = vst.msk [vmem:[%s100] sm:$0x1] %vm99, %v98
    %s102 = scalar_lea.vmem [#allocation0], 130
    %103 = vst.msk [vmem:[%s102] sm:$0x2] %vm99, %v98
    %s104 = scalar_lea.vmem [#allocation0], 33
    %105 = vst.msk [vmem:[%s104] sm:$0x4] %vm99, %v98
    %s106 = scalar_lea.vmem [#allocation0], 160
    %107 = vst.msk [vmem:[%s106] sm:$0x8] %vm99, %v98
    %s108 = scalar_lea.vmem [#allocation0], 63
    %109 = vst.msk [vmem:[%s108] sm:$0x10] %vm99, %v98
    %s110 = scalar_lea.vmem [#allocation0], 190
    %111 = vst.msk [vmem:[%s110] sm:$0x20] %vm99, %v98
    %s112 = scalar_lea.vmem [#allocation0], 93
    %113 = vst.msk [vmem:[%s112] sm:$0x40] %vm99, %v98
    %s114 = scalar_lea.vmem [#allocation0], 220
    %115 = vst.msk [vmem:[%s114] sm:$0x80] %vm99, %v98
    %v116 = vld.sshfl [vmem:[#allocation1] sm:$0xff pattern:$0x99999810]
    %s117 = scalar_lea.vmem [#allocation1], 16
    %v118 = vld.sshfl [vmem:[%s117] sm:$0xff pattern:$0x98100000]
    %vm119 = vcmask 1047556
    %v120 = vsel %vm119, %v118, %v116
    %121 = vrot.lane.b32.xlu0 %v120, 96
    %v122 = vpop.permute.xlu0 %121
    %vm123 = vcmask 64512
    %s124 = scalar_lea.vmem [#allocation0], 8
    %125 = vst.msk [vmem:[%s124] sm:$0x1] %vm123, %v122
    %s126 = scalar_lea.vmem [#allocation0], 135
    %127 = vst.msk [vmem:[%s126] sm:$0x2] %vm123, %v122
    %s128 = scalar_lea.vmem [#allocation0], 38
    %129 = vst.msk [vmem:[%s128] sm:$0x4] %vm123, %v122
    %s130 = scalar_lea.vmem [#allocation0], 165
    %131 = vst.msk [vmem:[%s130] sm:$0x8] %vm123, %v122
    %s132 = scalar_lea.vmem [#allocation0], 68
    %133 = vst.msk [vmem:[%s132] sm:$0x10] %vm123, %v122
    %s134 = scalar_lea.vmem [#allocation0], 195
    %135 = vst.msk [vmem:[%s134] sm:$0x20] %vm123, %v122
    %s136 = scalar_lea.vmem [#allocation0], 98
    %137 = vst.msk [vmem:[%s136] sm:$0x40] %vm123, %v122
    %s138 = scalar_lea.vmem [#allocation0], 225
    %139 = vst.msk [vmem:[%s138] sm:$0x80] %vm123, %v122
    %v140 = vld.sshfl [vmem:[#allocation1] sm:$0xff pattern:$0x99999810]
    %s141 = scalar_lea.vmem [#allocation1], 16
    %v142 = vld.sshfl [vmem:[%s141] sm:$0xff pattern:$0x98100000]
    %vm143 = vcmask 1047556
    %v144 = vsel %vm143, %v142, %v140
    %145 = vrot.lane.b32.xlu0 %v144, 88
    %v146 = vpop.permute.xlu0 %145
    %vm147 = vcmask 64512
    %s148 = scalar_lea.vmem [#allocation0], 9
    %149 = vst.msk [vmem:[%s148] sm:$0x1] %vm147, %v146
    %s150 = scalar_lea.vmem [#allocation0], 136
    %151 = vst.msk [vmem:[%s150] sm:$0x2] %vm147, %v146
    %s152 = scalar_lea.vmem [#allocation0], 39
    %153 = vst.msk [vmem:[%s152] sm:$0x4] %vm147, %v146
    %s154 = scalar_lea.vmem [#allocation0], 166
    %155 = vst.msk [vmem:[%s154] sm:$0x8] %vm147, %v146
    %s156 = scalar_lea.vmem [#allocation0], 69
    %157 = vst.msk [vmem:[%s156] sm:$0x10] %vm147, %v146
    %s158 = scalar_lea.vmem [#allocation0], 196
    %159 = vst.msk [vmem:[%s158] sm:$0x20] %vm147, %v146
    %s160 = scalar_lea.vmem [#allocation0], 99
    %161 = vst.msk [vmem:[%s160] sm:$0x40] %vm147, %v146
    %s162 = scalar_lea.vmem [#allocation0], 226
    %163 = vst.msk [vmem:[%s162] sm:$0x80] %vm147, %v146
    %v164 = vld.sshfl [vmem:[#allocation1] sm:$0xff pattern:$0x99999810]
    %s165 = scalar_lea.vmem [#allocation1], 16
    %v166 = vld.sshfl [vmem:[%s165] sm:$0xff pattern:$0x98100000]
    %vm167 = vcmask 1047556
    %v168 = vsel %vm167, %v166, %v164
    %169 = vrot.lane.b32.xlu0 %v168, 80
    %v170 = vpop.permute.xlu0 %169
    %vm171 = vcmask 64512
    %s172 = scalar_lea.vmem [#allocation0], 10
    %173 = vst.msk [vmem:[%s172] sm:$0x1] %vm171, %v170
    %s174 = scalar_lea.vmem [#allocation0], 137
    %175 = vst.msk [vmem:[%s174] sm:$0x2] %vm171, %v170
    %s176 = scalar_lea.vmem [#allocation0], 40
    %177 = vst.msk [vmem:[%s176] sm:$0x4] %vm171, %v170
    %s178 = scalar_lea.vmem [#allocation0], 167
    %179 = vst.msk [vmem:[%s178] sm:$0x8] %vm171, %v170
    %s180 = scalar_lea.vmem [#allocation0], 70
    %181 = vst.msk [vmem:[%s180] sm:$0x10] %vm171, %v170
    %s182 = scalar_lea.vmem [#allocation0], 197
    %183 = vst.msk [vmem:[%s182] sm:$0x20] %vm171, %v170
    %s184 = scalar_lea.vmem [#allocation0], 100
    %185 = vst.msk [vmem:[%s184] sm:$0x40] %vm171, %v170
    %s186 = scalar_lea.vmem [#allocation0], 227
    %187 = vst.msk [vmem:[%s186] sm:$0x80] %vm171, %v170
    %v188 = vld.sshfl [vmem:[#allocation1] sm:$0xff pattern:$0x99999810]
    %s189 = scalar_lea.vmem [#allocation1], 16
    %v190 = vld.sshfl [vmem:[%s189] sm:$0xff pattern:$0x98100000]
    %vm191 = vcmask 1047556
    %v192 = vsel %vm191, %v190, %v188
    %193 = vrot.lane.b32.xlu0 %v192, 72
    %v194 = vpop.permute.xlu0 %193
    %vm195 = vcmask 64512
    %s196 = scalar_lea.vmem [#allocation0], 11
    %197 = vst.msk [vmem:[%s196] sm:$0x1] %vm195, %v194
    %s198 = scalar_lea.vmem [#allocation0], 138
    %199 = vst.msk [vmem:[%s198] sm:$0x2] %vm195, %v194
    %s200 = scalar_lea.vmem [#allocation0], 41
    %201 = vst.msk [vmem:[%s200] sm:$0x4] %vm195, %v194
    %s202 = scalar_lea.vmem [#allocation0], 168
    %203 = vst.msk [vmem:[%s202] sm:$0x8] %vm195, %v194
    %s204 = scalar_lea.vmem [#allocation0], 71
    %205 = vst.msk [vmem:[%s204] sm:$0x10] %vm195, %v194
    %s206 = scalar_lea.vmem [#allocation0], 198
    %207 = vst.msk [vmem:[%s206] sm:$0x20] %vm195, %v194
    %s208 = scalar_lea.vmem [#allocation0], 101
    %209 = vst.msk [vmem:[%s208] sm:$0x40] %vm195, %v194
    %s210 = scalar_lea.vmem [#allocation0], 228
    %211 = vst.msk [vmem:[%s210] sm:$0x80] %vm195, %v194
    %v212 = vld.sshfl [vmem:[#allocation1] sm:$0xff pattern:$0x99999810]
    %s213 = scalar_lea.vmem [#allocation1], 16
    %v214 = vld.sshfl [vmem:[%s213] sm:$0xff pattern:$0x98100000]
    %vm215 = vcmask 1047556
    %v216 = vsel %vm215, %v214, %v212
    %217 = vrot.lane.b32.xlu0 %v216, 64
    %v218 = vpop.permute.xlu0 %217
    %vm219 = vcmask 64512
    %s220 = scalar_lea.vmem [#allocation0], 16
    %221 = vst.msk [vmem:[%s220] sm:$0x1] %vm219, %v218
    %s222 = scalar_lea.vmem [#allocation0], 143
    %223 = vst.msk [vmem:[%s222] sm:$0x2] %vm219, %v218
    %s224 = scalar_lea.vmem [#allocation0], 46
    %225 = vst.msk [vmem:[%s224] sm:$0x4] %vm219, %v218
    %s226 = scalar_lea.vmem [#allocation0], 173
    %227 = vst.msk [vmem:[%s226] sm:$0x8] %vm219, %v218
    %s228 = scalar_lea.vmem [#allocation0], 76
    %229 = vst.msk [vmem:[%s228] sm:$0x10] %vm219, %v218
    %s230 = scalar_lea.vmem [#allocation0], 203
    %231 = vst.msk [vmem:[%s230] sm:$0x20] %vm219, %v218
    %s232 = scalar_lea.vmem [#allocation0], 106
    %233 = vst.msk [vmem:[%s232] sm:$0x40] %vm219, %v218
    %s234 = scalar_lea.vmem [#allocation0], 233
    %235 = vst.msk [vmem:[%s234] sm:$0x80] %vm219, %v218
    %v236 = vld.sshfl [vmem:[#allocation1] sm:$0xff pattern:$0x99999810]
    %s237 = scalar_lea.vmem [#allocation1], 16
    %v238 = vld.sshfl [vmem:[%s237] sm:$0xff pattern:$0x98100000]
    %vm239 = vcmask 1047556
    %v240 = vsel %vm239, %v238, %v236
    %241 = vrot.lane.b32.xlu0 %v240, 56
    %v242 = vpop.permute.xlu0 %241
    %vm243 = vcmask 64512
    %s244 = scalar_lea.vmem [#allocation0], 17
    %245 = vst.msk [vmem:[%s244] sm:$0x1] %vm243, %v242
    %s246 = scalar_lea.vmem [#allocation0], 144
    %247 = vst.msk [vmem:[%s246] sm:$0x2] %vm243, %v242
    %s248 = scalar_lea.vmem [#allocation0], 47
    %249 = vst.msk [vmem:[%s248] sm:$0x4] %vm243, %v242
    %s250 = scalar_lea.vmem [#allocation0], 174
    %251 = vst.msk [vmem:[%s250] sm:$0x8] %vm243, %v242
    %s252 = scalar_lea.vmem [#allocation0], 77
    %253 = vst.msk [vmem:[%s252] sm:$0x10] %vm243, %v242
    %s254 = scalar_lea.vmem [#allocation0], 204
    %255 = vst.msk [vmem:[%s254] sm:$0x20] %vm243, %v242
    %s256 = scalar_lea.vmem [#allocation0], 107
    %257 = vst.msk [vmem:[%s256] sm:$0x40] %vm243, %v242
    %s258 = scalar_lea.vmem [#allocation0], 234
    %259 = vst.msk [vmem:[%s258] sm:$0x80] %vm243, %v242
    %v260 = vld.sshfl [vmem:[#allocation1] sm:$0xff pattern:$0x99999810]
    %s261 = scalar_lea.vmem [#allocation1], 16
    %v262 = vld.sshfl [vmem:[%s261] sm:$0xff pattern:$0x98100000]
    %vm263 = vcmask 1047556
    %v264 = vsel %vm263, %v262, %v260
    %265 = vrot.lane.b32.xlu0 %v264, 48
    %v266 = vpop.permute.xlu0 %265
    %vm267 = vcmask 64512
    %s268 = scalar_lea.vmem [#allocation0], 18
    %269 = vst.msk [vmem:[%s268] sm:$0x1] %vm267, %v266
    %s270 = scalar_lea.vmem [#allocation0], 145
    %271 = vst.msk [vmem:[%s270] sm:$0x2] %vm267, %v266
    %s272 = scalar_lea.vmem [#allocation0], 48
    %273 = vst.msk [vmem:[%s272] sm:$0x4] %vm267, %v266
    %s274 = scalar_lea.vmem [#allocation0], 175
    %275 = vst.msk [vmem:[%s274] sm:$0x8] %vm267, %v266
    %s276 = scalar_lea.vmem [#allocation0], 78
    %277 = vst.msk [vmem:[%s276] sm:$0x10] %vm267, %v266
    %s278 = scalar_lea.vmem [#allocation0], 205
    %279 = vst.msk [vmem:[%s278] sm:$0x20] %vm267, %v266
    %s280 = scalar_lea.vmem [#allocation0], 108
    %281 = vst.msk [vmem:[%s280] sm:$0x40] %vm267, %v266
    %s282 = scalar_lea.vmem [#allocation0], 235
    %283 = vst.msk [vmem:[%s282] sm:$0x80] %vm267, %v266
    %v284 = vld.sshfl [vmem:[#allocation1] sm:$0xff pattern:$0x99999810]
    %s285 = scalar_lea.vmem [#allocation1], 16
    %v286 = vld.sshfl [vmem:[%s285] sm:$0xff pattern:$0x98100000]
    %vm287 = vcmask 1047556
    %v288 = vsel %vm287, %v286, %v284
    %289 = vrot.lane.b32.xlu0 %v288, 40
    %v290 = vpop.permute.xlu0 %289
    %vm291 = vcmask 64512
    %s292 = scalar_lea.vmem [#allocation0], 19
    %293 = vst.msk [vmem:[%s292] sm:$0x1] %vm291, %v290
    %s294 = scalar_lea.vmem [#allocation0], 146
    %295 = vst.msk [vmem:[%s294] sm:$0x2] %vm291, %v290
    %s296 = scalar_lea.vmem [#allocation0], 49
    %297 = vst.msk [vmem:[%s296] sm:$0x4] %vm291, %v290
    %s298 = scalar_lea.vmem [#allocation0], 176
    %299 = vst.msk [vmem:[%s298] sm:$0x8] %vm291, %v290
    %s300 = scalar_lea.vmem [#allocation0], 79
    %301 = vst.msk [vmem:[%s300] sm:$0x10] %vm291, %v290
    %s302 = scalar_lea.vmem [#allocation0], 206
    %303 = vst.msk [vmem:[%s302] sm:$0x20] %vm291, %v290
    %s304 = scalar_lea.vmem [#allocation0], 109
    %305 = vst.msk [vmem:[%s304] sm:$0x40] %vm291, %v290
    %s306 = scalar_lea.vmem [#allocation0], 236
    %307 = vst.msk [vmem:[%s306] sm:$0x80] %vm291, %v290
    %v308 = vld.sshfl [vmem:[#allocation1] sm:$0xff pattern:$0x99999810]
    %s309 = scalar_lea.vmem [#allocation1], 16
    %v310 = vld.sshfl [vmem:[%s309] sm:$0xff pattern:$0x98100000]
    %vm311 = vcmask 1047556
    %v312 = vsel %vm311, %v310, %v308
    %313 = vrot.lane.b32.xlu0 %v312, 32
    %v314 = vpop.permute.xlu0 %313
    %vm315 = vcmask 64512
    %s316 = scalar_lea.vmem [#allocation0], 24
    %317 = vst.msk [vmem:[%s316] sm:$0x1] %vm315, %v314
    %s318 = scalar_lea.vmem [#allocation0], 151
    %319 = vst.msk [vmem:[%s318] sm:$0x2] %vm315, %v314
    %s320 = scalar_lea.vmem [#allocation0], 54
    %321 = vst.msk [vmem:[%s320] sm:$0x4] %vm315, %v314
    %s322 = scalar_lea.vmem [#allocation0], 181
    %323 = vst.msk [vmem:[%s322] sm:$0x8] %vm315, %v314
    %s324 = scalar_lea.vmem [#allocation0], 84
    %325 = vst.msk [vmem:[%s324] sm:$0x10] %vm315, %v314
    %s326 = scalar_lea.vmem [#allocation0], 211
    %327 = vst.msk [vmem:[%s326] sm:$0x20] %vm315, %v314
    %s328 = scalar_lea.vmem [#allocation0], 114
    %329 = vst.msk [vmem:[%s328] sm:$0x40] %vm315, %v314
    %s330 = scalar_lea.vmem [#allocation0], 241
    %331 = vst.msk [vmem:[%s330] sm:$0x80] %vm315, %v314
    %v332 = vld.sshfl [vmem:[#allocation1] sm:$0xff pattern:$0x99999810]
    %s333 = scalar_lea.vmem [#allocation1], 16
    %v334 = vld.sshfl [vmem:[%s333] sm:$0xff pattern:$0x98100000]
    %vm335 = vcmask 1047556
    %v336 = vsel %vm335, %v334, %v332
    %337 = vrot.lane.b32.xlu0 %v336, 24
    %v338 = vpop.permute.xlu0 %337
    %vm339 = vcmask 64512
    %s340 = scalar_lea.vmem [#allocation0], 25
    %341 = vst.msk [vmem:[%s340] sm:$0x1] %vm339, %v338
    %s342 = scalar_lea.vmem [#allocation0], 152
    %343 = vst.msk [vmem:[%s342] sm:$0x2] %vm339, %v338
    %s344 = scalar_lea.vmem [#allocation0], 55
    %345 = vst.msk [vmem:[%s344] sm:$0x4] %vm339, %v338
    %s346 = scalar_lea.vmem [#allocation0], 182
    %347 = vst.msk [vmem:[%s346] sm:$0x8] %vm339, %v338
    %s348 = scalar_lea.vmem [#allocation0], 85
    %349 = vst.msk [vmem:[%s348] sm:$0x10] %vm339, %v338
    %s350 = scalar_lea.vmem [#allocation0], 212
    %351 = vst.msk [vmem:[%s350] sm:$0x20] %vm339, %v338
    %s352 = scalar_lea.vmem [#allocation0], 115
    %353 = vst.msk [vmem:[%s352] sm:$0x40] %vm339, %v338
    %s354 = scalar_lea.vmem [#allocation0], 242
    %355 = vst.msk [vmem:[%s354] sm:$0x80] %vm339, %v338
    %v356 = vld.sshfl [vmem:[#allocation1] sm:$0xff pattern:$0x99999810]
    %s357 = scalar_lea.vmem [#allocation1], 16
    %v358 = vld.sshfl [vmem:[%s357] sm:$0xff pattern:$0x98100000]
    %vm359 = vcmask 1047556
    %v360 = vsel %vm359, %v358, %v356
    %361 = vrot.lane.b32.xlu0 %v360, 16
    %v362 = vpop.permute.xlu0 %361
    %vm363 = vcmask 64512
    %s364 = scalar_lea.vmem [#allocation0], 26
    %365 = vst.msk [vmem:[%s364] sm:$0x1] %vm363, %v362
    %s366 = scalar_lea.vmem [#allocation0], 153
    %367 = vst.msk [vmem:[%s366] sm:$0x2] %vm363, %v362
    %s368 = scalar_lea.vmem [#allocation0], 56
    %369 = vst.msk [vmem:[%s368] sm:$0x4] %vm363, %v362
    %s370 = scalar_lea.vmem [#allocation0], 183
    %371 = vst.msk [vmem:[%s370] sm:$0x8] %vm363, %v362
    %s372 = scalar_lea.vmem [#allocation0], 86
    %373 = vst.msk [vmem:[%s372] sm:$0x10] %vm363, %v362
    %s374 = scalar_lea.vmem [#allocation0], 213
    %375 = vst.msk [vmem:[%s374] sm:$0x20] %vm363, %v362
    %s376 = scalar_lea.vmem [#allocation0], 116
    %377 = vst.msk [vmem:[%s376] sm:$0x40] %vm363, %v362
    %s378 = scalar_lea.vmem [#allocation0], 243
    %379 = vst.msk [vmem:[%s378] sm:$0x80] %vm363, %v362
    %v380 = vld.sshfl [vmem:[#allocation1] sm:$0xff pattern:$0x99999810]
    %s381 = scalar_lea.vmem [#allocation1], 16
    %v382 = vld.sshfl [vmem:[%s381] sm:$0xff pattern:$0x98100000]
    %vm383 = vcmask 1047556
    %v384 = vsel %vm383, %v382, %v380
    %385 = vrot.lane.b32.xlu0 %v384, 8
    %v386 = vpop.permute.xlu0 %385
    %vm387 = vcmask 64512
    %s388 = scalar_lea.vmem [#allocation0], 27
    %389 = vst.msk [vmem:[%s388] sm:$0x1] %vm387, %v386
    %s390 = scalar_lea.vmem [#allocation0], 154
    %391 = vst.msk [vmem:[%s390] sm:$0x2] %vm387, %v386
    %s392 = scalar_lea.vmem [#allocation0], 57
    %393 = vst.msk [vmem:[%s392] sm:$0x4] %vm387, %v386
    %s394 = scalar_lea.vmem [#allocation0], 184
    %395 = vst.msk [vmem:[%s394] sm:$0x8] %vm387, %v386
    %s396 = scalar_lea.vmem [#allocation0], 87
    %397 = vst.msk [vmem:[%s396] sm:$0x10] %vm387, %v386
    %s398 = scalar_lea.vmem [#allocation0], 214
    %399 = vst.msk [vmem:[%s398] sm:$0x20] %vm387, %v386
    %s400 = scalar_lea.vmem [#allocation0], 117
    %401 = vst.msk [vmem:[%s400] sm:$0x40] %vm387, %v386
    %s402 = scalar_lea.vmem [#allocation0], 244
    %403 = vst.msk [vmem:[%s402] sm:$0x80] %vm387, %v386
    %s405 = ssub.s32 16, 1
    %v406 = vld [vmem:[#allocation0] sm:%s405]
    %s408 = ssub.s32 16, 1
    %409 = vst [vmem:[%s1] sm:%s408] %v406
    %s410 = scalar_lea.vmem [#allocation0], 8
    %v411 = vld [vmem:[%s410] sm:%s405]
    %s413 = ssub.s32 16, 1
    %s414 = scalar_lea.vmem %s1, 4
    %415 = vst [vmem:[%s414] sm:%s413] %v411
    %s416 = scalar_lea.vmem [#allocation0], 16
    %v417 = vld [vmem:[%s416] sm:%s405]
    %s419 = ssub.s32 16, 1
    %s420 = scalar_lea.vmem %s1, 8
    %421 = vst [vmem:[%s420] sm:%s419] %v417
    %s422 = scalar_lea.vmem [#allocation0], 24
    %v423 = vld [vmem:[%s422] sm:%s405]
    %s425 = ssub.s32 16, 1
    %s426 = scalar_lea.vmem %s1, 12
    %427 = vst [vmem:[%s426] sm:%s425] %v423
    %s428 = scalar_lea.vmem [#allocation0], 32
    %v429 = vld [vmem:[%s428] sm:%s405]
    %s431 = ssub.s32 16, 1
    %s432 = scalar_lea.vmem %s1, 16
    %433 = vst [vmem:[%s432] sm:%s431] %v429
    %s434 = scalar_lea.vmem [#allocation0], 40
    %v435 = vld [vmem:[%s434] sm:%s405]
    %s437 = ssub.s32 16, 1
    %s438 = scalar_lea.vmem %s1, 20
    %439 = vst [vmem:[%s438] sm:%s437] %v435
    %s440 = scalar_lea.vmem [#allocation0], 48
    %v441 = vld [vmem:[%s440] sm:%s405]
    %s443 = ssub.s32 16, 1
    %s444 = scalar_lea.vmem %s1, 24
    %445 = vst [vmem:[%s444] sm:%s443] %v441
    %s446 = scalar_lea.vmem [#allocation0], 56
    %v447 = vld [vmem:[%s446] sm:%s405]
    %s449 = ssub.s32 16, 1
    %s450 = scalar_lea.vmem %s1, 28
    %451 = vst [vmem:[%s450] sm:%s449] %v447
    %s452 = scalar_lea.vmem [#allocation0], 64
    %v453 = vld [vmem:[%s452] sm:%s405]
    %s455 = ssub.s32 16, 1
    %s456 = scalar_lea.vmem %s1, 32
    %457 = vst [vmem:[%s456] sm:%s455] %v453
    %s458 = scalar_lea.vmem [#allocation0], 72
    %v459 = vld [vmem:[%s458] sm:%s405]
    %s461 = ssub.s32 16, 1
    %s462 = scalar_lea.vmem %s1, 36
    %463 = vst [vmem:[%s462] sm:%s461] %v459
    %s464 = scalar_lea.vmem [#allocation0], 80
    %v465 = vld [vmem:[%s464] sm:%s405]
    %s467 = ssub.s32 16, 1
    %s468 = scalar_lea.vmem %s1, 40
    %469 = vst [vmem:[%s468] sm:%s467] %v465
    %s470 = scalar_lea.vmem [#allocation0], 88
    %v471 = vld [vmem:[%s470] sm:%s405]
    %s473 = ssub.s32 16, 1
    %s474 = scalar_lea.vmem %s1, 44
    %475 = vst [vmem:[%s474] sm:%s473] %v471
    %s476 = scalar_lea.vmem [#allocation0], 96
    %v477 = vld [vmem:[%s476] sm:%s405]
    %s479 = ssub.s32 16, 1
    %s480 = scalar_lea.vmem %s1, 48
    %481 = vst [vmem:[%s480] sm:%s479] %v477
    %s482 = scalar_lea.vmem [#allocation0], 104
    %v483 = vld [vmem:[%s482] sm:%s405]
    %s485 = ssub.s32 16, 1
    %s486 = scalar_lea.vmem %s1, 52
    %487 = vst [vmem:[%s486] sm:%s485] %v483
    %s488 = scalar_lea.vmem [#allocation0], 112
    %v489 = vld [vmem:[%s488] sm:%s405]
    %s491 = ssub.s32 16, 1
    %s492 = scalar_lea.vmem %s1, 56
    %493 = vst [vmem:[%s492] sm:%s491] %v489
    %s494 = scalar_lea.vmem [#allocation0], 120
    %v495 = vld [vmem:[%s494] sm:%s405]
    %s497 = ssub.s32 16, 1
    %s498 = scalar_lea.vmem %s1, 60
    %499 = vst [vmem:[%s498] sm:%s497] %v495
    %s500 = scalar_lea.vmem [#allocation0], 128
    %v501 = vld [vmem:[%s500] sm:%s405]
    %s503 = ssub.s32 16, 1
    %s504 = scalar_lea.vmem %s1, 64
    %505 = vst [vmem:[%s504] sm:%s503] %v501
    %s506 = scalar_lea.vmem [#allocation0], 136
    %v507 = vld [vmem:[%s506] sm:%s405]
    %s509 = ssub.s32 16, 1
    %s510 = scalar_lea.vmem %s1, 68
    %511 = vst [vmem:[%s510] sm:%s509] %v507
    %s512 = scalar_lea.vmem [#allocation0], 144
    %v513 = vld [vmem:[%s512] sm:%s405]
    %s515 = ssub.s32 16, 1
    %s516 = scalar_lea.vmem %s1, 72
    %517 = vst [vmem:[%s516] sm:%s515] %v513
    %s518 = scalar_lea.vmem [#allocation0], 152
    %v519 = vld [vmem:[%s518] sm:%s405]
    %s521 = ssub.s32 16, 1
    %s522 = scalar_lea.vmem %s1, 76
    %523 = vst [vmem:[%s522] sm:%s521] %v519
    %s524 = scalar_lea.vmem [#allocation0], 160
    %v525 = vld [vmem:[%s524] sm:%s405]
    %s527 = ssub.s32 16, 1
    %s528 = scalar_lea.vmem %s1, 80
    %529 = vst [vmem:[%s528] sm:%s527] %v525
    %s530 = scalar_lea.vmem [#allocation0], 168
    %v531 = vld [vmem:[%s530] sm:%s405]
    %s533 = ssub.s32 16, 1
    %s534 = scalar_lea.vmem %s1, 84
    %535 = vst [vmem:[%s534] sm:%s533] %v531
    %s536 = scalar_lea.vmem [#allocation0], 176
    %v537 = vld [vmem:[%s536] sm:%s405]
    %s539 = ssub.s32 16, 1
    %s540 = scalar_lea.vmem %s1, 88
    %541 = vst [vmem:[%s540] sm:%s539] %v537
    %s542 = scalar_lea.vmem [#allocation0], 184
    %v543 = vld [vmem:[%s542] sm:%s405]
    %s545 = ssub.s32 16, 1
    %s546 = scalar_lea.vmem %s1, 92
    %547 = vst [vmem:[%s546] sm:%s545] %v543
    %s548 = scalar_lea.vmem [#allocation0], 192
    %v549 = vld [vmem:[%s548] sm:%s405]
    %s551 = ssub.s32 16, 1
    %s552 = scalar_lea.vmem %s1, 96
    %553 = vst [vmem:[%s552] sm:%s551] %v549
    %s554 = scalar_lea.vmem [#allocation0], 200
    %v555 = vld [vmem:[%s554] sm:%s405]
    %s557 = ssub.s32 16, 1
    %s558 = scalar_lea.vmem %s1, 100
    %559 = vst [vmem:[%s558] sm:%s557] %v555
    %s560 = scalar_lea.vmem [#allocation0], 208
    %v561 = vld [vmem:[%s560] sm:%s405]
    %s563 = ssub.s32 16, 1
    %s564 = scalar_lea.vmem %s1, 104
    %565 = vst [vmem:[%s564] sm:%s563] %v561
    %s566 = scalar_lea.vmem [#allocation0], 216
    %v567 = vld [vmem:[%s566] sm:%s405]
    %s569 = ssub.s32 16, 1
    %s570 = scalar_lea.vmem %s1, 108
    %571 = vst [vmem:[%s570] sm:%s569] %v567
    %s572 = scalar_lea.vmem [#allocation0], 224
    %v573 = vld [vmem:[%s572] sm:%s405]
    %s575 = ssub.s32 16, 1
    %s576 = scalar_lea.vmem %s1, 112
    %577 = vst [vmem:[%s576] sm:%s575] %v573
    %s578 = scalar_lea.vmem [#allocation0], 232
    %v579 = vld [vmem:[%s578] sm:%s405]
    %s581 = ssub.s32 16, 1
    %s582 = scalar_lea.vmem %s1, 116
    %583 = vst [vmem:[%s582] sm:%s581] %v579
    %s584 = scalar_lea.vmem [#allocation0], 240
    %v585 = vld [vmem:[%s584] sm:%s405]
    %s587 = ssub.s32 16, 1
    %s588 = scalar_lea.vmem %s1, 120
    %589 = vst [vmem:[%s588] sm:%s587] %v585
    %s590 = scalar_lea.vmem [#allocation0], 248
    %v591 = vld [vmem:[%s590] sm:%s405]
    %s593 = ssub.s32 16, 1
    %s594 = scalar_lea.vmem %s1, 124
    %595 = vst [vmem:[%s594] sm:%s593] %v591

// kernel: path_attention_forward.3
$region0: #{path_attention_forward.3}
  #allocation0 [shape = 'u32[]', space=smem, size = 0x4, offset = 0x4, fixed_abs, tag = 'smem constant byte address 0x4 - core index']
  #allocation1 [shape = 'u32[72,128]{1,0:T(1,128)}', space=vmem, size = 0x9000, scoped, tag = 'internal scratch']
  %s0 = inlined_call_operand.vmem [shape: f32[32,96], index: 0, kind: input, shape index: {}]
  %s1 = inlined_call_operand.vmem [shape: f32[96,128], index: 1, kind: input, shape index: {}]
  %s2 = inlined_call_operand.vmem [shape: f32[1,128], index: 2, kind: input, shape index: {}]
  %s3 = inlined_call_operand.vmem [shape: f32[32,128], index: 3, kind: output, shape index: {}]
  %s4 = sld [smem:[#allocation0]]
  $region22: #{path_attention_forward.3} parent=0
    _
  %s6 = ssub.s32 1, %s4
  %s7 = scalar_select 0, %s6, %s4
  // Predicated region
  $region2: #{path_attention_forward.3} parent=0 // pred_check
    _
  $region3: #{path_attention_forward.3} parent=0 // pred_check_branch
    %9 = sbr.rel (0) target = $region5
  $region4: #{path_attention_forward.3} parent=0 // pred_region
    _
  $region5: #{path_attention_forward.3} parent=0 // pred_fallthru
    _
  // Predicated region
  $region6: #{path_attention_forward.3} parent=0 // pred_check
    _
  $region7: #{path_attention_forward.3} parent=0 // pred_check_branch
    %11 = sbr.rel (0) target = $region9
  $region8: #{path_attention_forward.3} parent=0 // pred_region
    _
  $region9: #{path_attention_forward.3} parent=0 // pred_fallthru
    _
  // Predicated region
  $region10: #{path_attention_forward.3} parent=0 // pred_check
    _
  $region11: #{path_attention_forward.3} parent=0 // pred_check_branch
    %13 = sbr.rel (0) target = $region13
  $region12: #{path_attention_forward.3} parent=0 // pred_region
    _
  $region13: #{path_attention_forward.3} parent=0 // pred_fallthru
    _
  %v14 = vld [vmem:[%s0] sm:$0xff]
  %v15 = vld [vmem:[%s0 + $0x8] sm:$0xff]
  %v16 = vld [vmem:[%s0 + $0x10] sm:$0xff]
  %v17 = vld [vmem:[%s0 + $0x18] sm:$0xff]
  %v18 = vld [vmem:[%s1] sm:$0xff]
  %v19 = vld [vmem:[%s1 + $0x8] sm:$0xff]
  %v20 = vld [vmem:[%s1 + $0x10] sm:$0xff]
  %v21 = vld [vmem:[%s1 + $0x18] sm:$0xff]
  %v22 = vld [vmem:[%s1 + $0x20] sm:$0xff]
  %v23 = vld [vmem:[%s1 + $0x28] sm:$0xff]
  %v24 = vld [vmem:[%s1 + $0x30] sm:$0xff]
  %v25 = vld [vmem:[%s1 + $0x38] sm:$0xff]
  %v26 = vld [vmem:[%s1 + $0x40] sm:$0xff]
  %v27 = vld [vmem:[%s1 + $0x48] sm:$0xff]
  %v28 = vld [vmem:[%s1 + $0x50] sm:$0xff]
  %v29 = vld [vmem:[%s1 + $0x58] sm:$0xff]
  %v30 = vld [vmem:[%s2] sm:$0x1]
  %v32 = vperm.slane %v30, 0
  %vm34 = vcmask 785408
  %v36 = vsel %vm34, %v14, 0
  %v39 = vsel %vm34, %v15, 0
  %v42 = vsel %vm34, %v16, 0
  %v45 = vsel %vm34, %v17, 0
  %47 = vmatpush.msra.mxu0 0.0
  %48 = vmatpush.msra.mxu0 0.0
  %49 = vmatpush.msra.mxu0 0.0
  %50 = vmatpush.msra.mxu0 0.0
  %51 = vmatpush.msra.mxu0 %v29
  %52 = vmatpush.msra.mxu0 %v28
  %53 = vmatpush.msra.mxu0 %v27
  %54 = vmatpush.msra.mxu0 %v26
  %55 = vmatpush.msra.mxu0 %v25
  %56 = vmatpush.msra.mxu0 %v24
  %57 = vmatpush.msra.mxu0 %v23
  %58 = vmatpush.msra.mxu0 %v22
  %59 = vmatpush.msra.mxu0 %v21
  %60 = vmatpush.msra.mxu0 %v20
  %61 = vmatpush.msra.mxu0 %v19
  %62 = vmatpush.msra.mxu0 %v18
  %63 = vmatmul.f32.gmra.mxu0 %v36
  %v64 = vpop.f32.mrf.mxu0
  %v65 = vadd.f32 %v32, %v64
  %66 = vmatmul.f32.gmra.mxu0 %v39
  %v67 = vpop.f32.mrf.mxu0
  %v68 = vadd.f32 %v32, %v67
  %69 = vmatmul.f32.gmra.mxu0 %v42
  %v70 = vpop.f32.mrf.mxu0
  %v71 = vadd.f32 %v32, %v70
  %72 = vmatmul.f32.gmra.mxu0 %v45
  %v73 = vpop.f32.mrf.mxu0
  %v74 = vadd.f32 %v32, %v73
  %75 = vdwg.mxu0
  %76 = vst [vmem:[%s3] sm:$0xff] %v65
  %77 = vst [vmem:[%s3 + $0x8] sm:$0xff] %v68
  %78 = vst [vmem:[%s3 + $0x10] sm:$0xff] %v71
  %79 = vst [vmem:[%s3 + $0x18] sm:$0xff] %v74
  // Predicated region
  $region14: #{path_attention_forward.3} parent=0 // pred_check
    _
  $region15: #{path_attention_forward.3} parent=0 // pred_check_branch
    %81 = sbr.rel (0) target = $region17
  $region16: #{path_attention_forward.3} parent=0 // pred_region
    _
  $region17: #{path_attention_forward.3} parent=0 // pred_fallthru
    _
  // Predicated region
  $region18: #{path_attention_forward.3} parent=0 // pred_check
    _
  $region19: #{path_attention_forward.3} parent=0 // pred_check_branch
    %83 = sbr.rel (0) target = $region21
  $region20: #{path_attention_forward.3} parent=0 // pred_region
    _
  $region21: #{path_attention_forward.3} parent=0 // pred_fallthru
    _

// kernel: path_attention_forward.4
$region0: #{path_attention_forward.4}
  #allocation0 [shape = 'u32[]', space=smem, size = 0x4, offset = 0x4, fixed_abs, tag = 'smem constant byte address 0x4 - core index']
  #allocation1 [shape = 'u32[72,128]{1,0:T(1,128)}', space=vmem, size = 0x9000, scoped, tag = 'internal scratch']
  %s0 = inlined_call_operand.vmem [shape: f32[2,2,512], index: 0, kind: input, shape index: {}]
  %s1 = inlined_call_operand.vmem [shape: f32[2,512,128], index: 1, kind: input, shape index: {}]
  %s2 = inlined_call_operand.vmem [shape: f32[2,1,128], index: 2, kind: input, shape index: {}]
  %s3 = inlined_call_operand.vmem [shape: f32[2,128,512], index: 3, kind: input, shape index: {}]
  %s4 = inlined_call_operand.vmem [shape: f32[2,1,512], index: 4, kind: input, shape index: {}]
  %s5 = inlined_call_operand.vmem [shape: f32[2,2,512], index: 5, kind: output, shape index: {}]
  %s6 = sld [smem:[#allocation0]]
  $region53: #{path_attention_forward.4} parent=0
    _
  %s8 = ssub.s32 1, %s6
  %s9 = scalar_select 0, %s8, %s6
  loop: start=0, step=1, limit=4
  $region2: #{path_attention_forward.4} parent=0 // loop_pre_header
    _
  $region3: #{path_attention_forward.4} parent=0 // loop_header
    %s11 = sphi 0, %s15
    %p12 = scmp.ge.s32.totalorder %s11, 4
    %s21 = sphi 0, %s23
    %s24 = sphi 0, %s21
    %s25 = sphi 0, %s24
    %s41 = sphi 0, %s25
    %s47 = sphi 0, %s49
    %s50 = sphi 0, %s47
    %s51 = sphi 0, %s50
    %s67 = sphi 0, %s51
    %s73 = sphi 0, %s75
    %s76 = sphi 0, %s73
    %s77 = sphi 0, %s76
    %s93 = sphi 0, %s77
    %s99 = sphi 0, %s101
    %s102 = sphi 0, %s99
    %s103 = sphi 0, %s102
    %s119 = sphi 0, %s103
    %s125 = sphi 0, %s127
    %s128 = sphi 0, %s125
    %s129 = sphi 0, %s128
    %s145 = sphi 0, %s129
    %s151 = sphi 0, %s153
    %s154 = sphi 0, %s151
    %s155 = sphi 0, %s154
    %s171 = sphi 0, %s155
  $region4: #{path_attention_forward.4} parent=0 // loop_header_branch
    %14 = sbr.rel (%p12) target = $region8
  $region5: #{path_attention_forward.4} parent=0 // loop_body
    %s16 = ssub.s32 %s11, 1
    %s17 = ssub.s32 %s11, 2
    %s18 = sadd.s32 %s11, 1
    %s19 = ssub.s32 %s11, %s18
    %p20 = scmp.eq.s32.totalorder %s19, 0
    %s22 = sadd.s32 %s21, 1
    %s23 = scalar_select %p20, %s21, %s22
    %p26 = pneg %p20
    %p27 = scmp.eq.s32.totalorder %s11, 1
    %p28 = por %p26, %p27
    %p29 = scmp.ne.s32.totalorder %s21, %s24
    %p30 = scmp.eq.s32.totalorder %s11, 0
    %p31 = por %p29, %p30
    %p32 = scmp.ne.s32.totalorder %s21, %s24
    %p33 = scmp.eq.s32.totalorder %s16, 1
    %p34 = por %p32, %p33
    %p35 = scmp.ne.s32.totalorder %s24, %s25
    %p36 = scmp.eq.s32.totalorder %s16, 0
    %p37 = por %p35, %p36
    %p38 = scmp.ne.s32.totalorder %s24, %s25
    %p39 = scmp.eq.s32.totalorder %s17, 1
    %p40 = por %p38, %p39
    %p42 = scmp.ne.s32.totalorder %s25, %s41
    %p43 = scmp.eq.s32.totalorder %s17, 0
    %p44 = por %p42, %p43
    %s45 = ssub.s32 %s11, %s18
    %p46 = scmp.eq.s32.totalorder %s45, 0
    %s48 = sadd.s32 %s47, 1
    %s49 = scalar_select %p46, %s47, %s48
    %p52 = pneg %p46
    %p53 = scmp.eq.s32.totalorder %s11, 1
    %p54 = por %p52, %p53
    %p55 = scmp.ne.s32.totalorder %s47, %s50
    %p56 = scmp.eq.s32.totalorder %s11, 0
    %p57 = por %p55, %p56
    %p58 = scmp.ne.s32.totalorder %s47, %s50
    %p59 = scmp.eq.s32.totalorder %s16, 1
    %p60 = por %p58, %p59
    %p61 = scmp.ne.s32.totalorder %s50, %s51
    %p62 = scmp.eq.s32.totalorder %s16, 0
    %p63 = por %p61, %p62
    %p64 = scmp.ne.s32.totalorder %s50, %s51
    %p65 = scmp.eq.s32.totalorder %s17, 1
    %p66 = por %p64, %p65
    %p68 = scmp.ne.s32.totalorder %s51, %s67
    %p69 = scmp.eq.s32.totalorder %s17, 0
    %p70 = por %p68, %p69
    %s71 = ssub.s32 %s11, %s18
    %p72 = scmp.eq.s32.totalorder %s71, 0
    %s74 = sadd.s32 %s73, 1
    %s75 = scalar_select %p72, %s73, %s74
    %p78 = pneg %p72
    %p79 = scmp.eq.s32.totalorder %s11, 1
    %p80 = por %p78, %p79
    %p81 = scmp.ne.s32.totalorder %s73, %s76
    %p82 = scmp.eq.s32.totalorder %s11, 0
    %p83 = por %p81, %p82
    %p84 = scmp.ne.s32.totalorder %s73, %s76
    %p85 = scmp.eq.s32.totalorder %s16, 1
    %p86 = por %p84, %p85
    %p87 = scmp.ne.s32.totalorder %s76, %s77
    %p88 = scmp.eq.s32.totalorder %s16, 0
    %p89 = por %p87, %p88
    %p90 = scmp.ne.s32.totalorder %s76, %s77
    %p91 = scmp.eq.s32.totalorder %s17, 1
    %p92 = por %p90, %p91
    %p94 = scmp.ne.s32.totalorder %s77, %s93
    %p95 = scmp.eq.s32.totalorder %s17, 0
    %p96 = por %p94, %p95
    %s97 = ssub.s32 %s11, %s18
    %p98 = scmp.eq.s32.totalorder %s97, 0
    %s100 = sadd.s32 %s99, 1
    %s101 = scalar_select %p98, %s99, %s100
    %p104 = pneg %p98
    %p105 = scmp.eq.s32.totalorder %s11, 1
    %p106 = por %p104, %p105
    %p107 = scmp.ne.s32.totalorder %s99, %s102
    %p108 = scmp.eq.s32.totalorder %s11, 0
    %p109 = por %p107, %p108
    %p110 = scmp.ne.s32.totalorder %s99, %s102
    %p111 = scmp.eq.s32.totalorder %s16, 1
    %p112 = por %p110, %p111
    %p113 = scmp.ne.s32.totalorder %s102, %s103
    %p114 = scmp.eq.s32.totalorder %s16, 0
    %p115 = por %p113, %p114
    %p116 = scmp.ne.s32.totalorder %s102, %s103
    %p117 = scmp.eq.s32.totalorder %s17, 1
    %p118 = por %p116, %p117
    %p120 = scmp.ne.s32.totalorder %s103, %s119
    %p121 = scmp.eq.s32.totalorder %s17, 0
    %p122 = por %p120, %p121
    %s123 = ssub.s32 %s11, %s18
    %p124 = scmp.eq.s32.totalorder %s123, 0
    %s126 = sadd.s32 %s125, 1
    %s127 = scalar_select %p124, %s125, %s126
    %p130 = pneg %p124
    %p131 = scmp.eq.s32.totalorder %s11, 1
    %p132 = por %p130, %p131
    %p133 = scmp.ne.s32.totalorder %s125, %s128
    %p134 = scmp.eq.s32.totalorder %s11, 0
    %p135 = por %p133, %p134
    %p136 = scmp.ne.s32.totalorder %s125, %s128
    %p137 = scmp.eq.s32.totalorder %s16, 1
    %p138 = por %p136, %p137
    %p139 = scmp.ne.s32.totalorder %s128, %s129
    %p140 = scmp.eq.s32.totalorder %s16, 0
    %p141 = por %p139, %p140
    %p142 = scmp.ne.s32.totalorder %s128, %s129
    %p143 = scmp.eq.s32.totalorder %s17, 1
    %p144 = por %p142, %p143
    %p146 = scmp.ne.s32.totalorder %s129, %s145
    %p147 = scmp.eq.s32.totalorder %s17, 0
    %p148 = por %p146, %p147
    %s149 = ssub.s32 %s11, %s18
    %p150 = scmp.eq.s32.totalorder %s149, 0
    %s152 = sadd.s32 %s151, 1
    %s153 = scalar_select %p150, %s151, %s152
    %p156 = pneg %p150
    %p157 = scmp.eq.s32.totalorder %s11, 1
    %p158 = por %p156, %p157
    %p159 = scmp.ne.s32.totalorder %s151, %s154
    %p160 = scmp.eq.s32.totalorder %s11, 0
    %p161 = por %p159, %p160
    %p162 = scmp.ne.s32.totalorder %s151, %s154
    %p163 = scmp.eq.s32.totalorder %s16, 1
    %p164 = por %p162, %p163
    %p165 = scmp.ne.s32.totalorder %s154, %s155
    %p166 = scmp.eq.s32.totalorder %s16, 0
    %p167 = por %p165, %p166
    %p168 = scmp.ne.s32.totalorder %s154, %s155
    %p169 = scmp.eq.s32.totalorder %s17, 1
    %p170 = por %p168, %p169
    %p172 = scmp.ne.s32.totalorder %s155, %s171
    %p173 = scmp.eq.s32.totalorder %s17, 0
    %p174 = por %p172, %p173
    %p175 = scmp.le.s32.totalorder 1, %s11
    %p176 = scmp.lt.s32.totalorder %s11, 3
    %p177 = pnand %p175, %p176
    %p178 = pneg %p177
    // Predicated region
    $region9: #{path_attention_forward.4} parent=5 // pred_check
      _
    $region10: #{path_attention_forward.4} parent=5 // pred_check_branch
      %180 = sbr.rel (%p177) target = $region12
    $region11: #{path_attention_forward.4} parent=5 // pred_region
      %s181 = ssub.s32 %s11, 1
    $region12: #{path_attention_forward.4} parent=5 // pred_fallthru
      _
    %p182 = scmp.lt.s32.totalorder %s11, 2
    // Predicated region
    $region13: #{path_attention_forward.4} parent=5 // pred_check
      %p183 = pneg %p182
    $region14: #{path_attention_forward.4} parent=5 // pred_check_branch
      %185 = sbr.rel (%p183) target = $region16
    $region15: #{path_attention_forward.4} parent=5 // pred_region
      // Predicated region
      $region17: #{path_attention_forward.4} parent=15 // pred_check
        %p186 = pneg %p31
      $region18: #{path_attention_forward.4} parent=15 // pred_check_branch
        %188 = sbr.rel (%p186) target = $region20
      $region19: #{path_attention_forward.4} parent=15 // pred_region
        %p189 = scmp.lt.s32.totalorder %s11, 1
        %s190 = scalar_select %p189, %s11, 1
        %s191 = smul.addr %s190, 4
        %s192 = smul.addr %s191, 2
        %s193 = scalar_lea.vmem %s0, %s192
      $region20: #{path_attention_forward.4} parent=15 // pred_fallthru
        _
      // Predicated region
      $region21: #{path_attention_forward.4} parent=15 // pred_check
        %p194 = pneg %p57
      $region22: #{path_attention_forward.4} parent=15 // pred_check_branch
        %196 = sbr.rel (%p194) target = $region24
      $region23: #{path_attention_forward.4} parent=15 // pred_region
        %p197 = scmp.lt.s32.totalorder %s11, 1
        %s198 = scalar_select %p197, %s11, 1
        %s199 = smul.addr %s198, 64
        %s200 = smul.addr %s199, 8
        %s201 = scalar_lea.vmem %s1, %s200
      $region24: #{path_attention_forward.4} parent=15 // pred_fallthru
        _
      // Predicated region
      $region25: #{path_attention_forward.4} parent=15 // pred_check
        %p202 = pneg %p83
      $region26: #{path_attention_forward.4} parent=15 // pred_check_branch
        %204 = sbr.rel (%p202) target = $region28
      $region27: #{path_attention_forward.4} parent=15 // pred_region
        %p205 = scmp.lt.s32.totalorder %s11, 1
        %s206 = scalar_select %p205, %s11, 1
        %s207 = scalar_lea.vmem %s2, %s206
      $region28: #{path_attention_forward.4} parent=15 // pred_fallthru
        _
      // Predicated region
      $region29: #{path_attention_forward.4} parent=15 // pred_check
        %p208 = pneg %p109
      $region30: #{path_attention_forward.4} parent=15 // pred_check_branch
        %210 = sbr.rel (%p208) target = $region32
      $region31: #{path_attention_forward.4} parent=15 // pred_region
        %p211 = scmp.lt.s32.totalorder %s11, 1
        %s212 = scalar_select %p211, %s11, 1
        %s213 = smul.addr %s212, 64
        %s214 = smul.addr %s213, 8
        %s215 = scalar_lea.vmem %s3, %s214
      $region32: #{path_attention_forward.4} parent=15 // pred_fallthru
        _
      // Predicated region
      $region33: #{path_attention_forward.4} parent=15 // pred_check
        %p216 = pneg %p135
      $region34: #{path_attention_forward.4} parent=15 // pred_check_branch
        %218 = sbr.rel (%p216) target = $region36
      $region35: #{path_attention_forward.4} parent=15 // pred_region
        %p219 = scmp.lt.s32.totalorder %s11, 1
        %s220 = scalar_select %p219, %s11, 1
        %s221 = smul.addr %s220, 4
        %s222 = scalar_lea.vmem %s4, %s221
      $region36: #{path_attention_forward.4} parent=15 // pred_fallthru
        _
    $region16: #{path_attention_forward.4} parent=5 // pred_fallthru
      _
    %p223 = scmp.le.s32.totalorder 1, %s11
    %p224 = scmp.lt.s32.totalorder %s11, 3
    %p225 = pnand %p223, %p224
    %p226 = pneg %p225
    // Predicated region
    $region37: #{path_attention_forward.4} parent=5 // pred_check
      _
    $region38: #{path_attention_forward.4} parent=5 // pred_check_branch
      %228 = sbr.rel (%p225) target = $region40
    $region39: #{path_attention_forward.4} parent=5 // pred_region
      %s229 = ssub.s32 %s11, 1
      %p230 = scmp.lt.s32.totalorder %s16, 1
      %s231 = scalar_select %p230, %s16, 1
      %s232 = smul.addr %s231, 4
      %s233 = smul.addr %s232, 2
      %s234 = scalar_lea.vmem %s0, %s233
      %p235 = pneg %p37
      %p236 = pneg %p34
      %p237 = scmp.lt.s32.totalorder %s16, 1
      %s238 = scalar_select %p237, %s16, 1
      %s239 = smul.addr %s238, 64
      %s240 = smul.addr %s239, 8
      %s241 = scalar_lea.vmem %s1, %s240
      %p242 = pneg %p63
      %p243 = pneg %p60
      %p244 = scmp.lt.s32.totalorder %s16, 1
      %s245 = scalar_select %p244, %s16, 1
      %s246 = scalar_lea.vmem %s2, %s245
      %p247 = pneg %p89
      %p248 = pneg %p86
      %p249 = scmp.lt.s32.totalorder %s16, 1
      %s250 = scalar_select %p249, %s16, 1
      %s251 = smul.addr %s250, 64
      %s252 = smul.addr %s251, 8
      %s253 = scalar_lea.vmem %s3, %s252
      %p254 = pneg %p115
      %p255 = pneg %p112
      %p256 = scmp.lt.s32.totalorder %s16, 1
      %s257 = scalar_select %p256, %s16, 1
      %s258 = smul.addr %s257, 4
      %s259 = scalar_lea.vmem %s4, %s258
      %p260 = pneg %p141
      %p261 = pneg %p138
      %p262 = pneg %p167
      %p263 = pneg %p164
      %p264 = scmp.lt.s32.totalorder %s16, 1
      %s265 = scalar_select %p264, %s16, 1
      %s266 = smul.addr %s265, 4
      %s267 = smul.addr %s266, 2
      %s268 = scalar_lea.vmem %s5, %s267
      %p269 = scmp.lt.s32.totalorder %s16, 1
      %s270 = scalar_select %p269, %s16, 1
      %s271 = smul.addr %s270, 4
      %s272 = smul.addr %s271, 2
      %s273 = scalar_lea.vmem %s0, %s272
      %p274 = scmp.lt.s32.totalorder %s16, 1
      %s275 = scalar_select %p274, %s16, 1
      %s276 = smul.addr %s275, 64
      %s277 = smul.addr %s276, 8
      %s278 = scalar_lea.vmem %s1, %s277
      %p279 = scmp.lt.s32.totalorder %s16, 1
      %s280 = scalar_select %p279, %s16, 1
      %s281 = scalar_lea.vmem %s2, %s280
      %p282 = scmp.lt.s32.totalorder %s16, 1
      %s283 = scalar_select %p282, %s16, 1
      %s284 = smul.addr %s283, 64
      %s285 = smul.addr %s284, 8
      %s286 = scalar_lea.vmem %s3, %s285
      %p287 = scmp.lt.s32.totalorder %s16, 1
      %s288 = scalar_select %p287, %s16, 1
      %s289 = smul.addr %s288, 4
      %s290 = scalar_lea.vmem %s4, %s289
      %p291 = scmp.lt.s32.totalorder %s16, 1
      %s292 = scalar_select %p291, %s16, 1
      %s293 = smul.addr %s292, 4
      %s294 = smul.addr %s293, 2
      %s295 = scalar_lea.vmem %s5, %s294
      %v296 = vld [vmem:[%s273] sm:$0xff]
      %v297 = vld [vmem:[%s278] sm:$0xff]
      %v298 = vld [vmem:[%s278 + $0x8] sm:$0xff]
      %v299 = vld [vmem:[%s278 + $0x10] sm:$0xff]
      %v300 = vld [vmem:[%s278 + $0x18] sm:$0xff]
      %v301 = vld [vmem:[%s278 + $0x20] sm:$0xff]
      %v302 = vld [vmem:[%s278 + $0x28] sm:$0xff]
      %v303 = vld [vmem:[%s278 + $0x30] sm:$0xff]
      %v304 = vld [vmem:[%s278 + $0x38] sm:$0xff]
      %v305 = vld [vmem:[%s278 + $0x40] sm:$0xff]
      %v306 = vld [vmem:[%s278 + $0x48] sm:$0xff]
      %v307 = vld [vmem:[%s278 + $0x50] sm:$0xff]
      %v308 = vld [vmem:[%s278 + $0x58] sm:$0xff]
      %v309 = vld [vmem:[%s278 + $0x60] sm:$0xff]
      %v310 = vld [vmem:[%s278 + $0x68] sm:$0xff]
      %v311 = vld [vmem:[%s278 + $0x70] sm:$0xff]
      %v312 = vld [vmem:[%s278 + $0x78] sm:$0xff]
      %v313 = vld [vmem:[%s278 + $0x80] sm:$0xff]
      %v314 = vld [vmem:[%s278 + $0x88] sm:$0xff]
      %v315 = vld [vmem:[%s278 + $0x90] sm:$0xff]
      %v316 = vld [vmem:[%s278 + $0x98] sm:$0xff]
      %v317 = vld [vmem:[%s278 + $0xa0] sm:$0xff]
      %v318 = vld [vmem:[%s278 + $0xa8] sm:$0xff]
      %v319 = vld [vmem:[%s278 + $0xb0] sm:$0xff]
      %v320 = vld [vmem:[%s278 + $0xb8] sm:$0xff]
      %v321 = vld [vmem:[%s278 + $0xc0] sm:$0xff]
      %v322 = vld [vmem:[%s278 + $0xc8] sm:$0xff]
      %v323 = vld [vmem:[%s278 + $0xd0] sm:$0xff]
      %v324 = vld [vmem:[%s278 + $0xd8] sm:$0xff]
      %v325 = vld [vmem:[%s278 + $0xe0] sm:$0xff]
      %v326 = vld [vmem:[%s278 + $0xe8] sm:$0xff]
      %v327 = vld [vmem:[%s278 + $0xf0] sm:$0xff]
      %v328 = vld [vmem:[%s278 + $0xf8] sm:$0xff]
      %v329 = vld [vmem:[%s278 + $0x100] sm:$0xff]
      %v330 = vld [vmem:[%s278 + $0x108] sm:$0xff]
      %v331 = vld [vmem:[%s278 + $0x110] sm:$0xff]
      %v332 = vld [vmem:[%s278 + $0x118] sm:$0xff]
      %v333 = vld [vmem:[%s278 + $0x120] sm:$0xff]
      %v334 = vld [vmem:[%s278 + $0x128] sm:$0xff]
      %v335 = vld [vmem:[%s278 + $0x130] sm:$0xff]
      %v336 = vld [vmem:[%s278 + $0x138] sm:$0xff]
      %v337 = vld [vmem:[%s278 + $0x140] sm:$0xff]
      %v338 = vld [vmem:[%s278 + $0x148] sm:$0xff]
      %v339 = vld [vmem:[%s278 + $0x150] sm:$0xff]
      %v340 = vld [vmem:[%s278 + $0x158] sm:$0xff]
      %v341 = vld [vmem:[%s278 + $0x160] sm:$0xff]
      %v342 = vld [vmem:[%s278 + $0x168] sm:$0xff]
      %v343 = vld [vmem:[%s278 + $0x170] sm:$0xff]
      %v344 = vld [vmem:[%s278 + $0x178] sm:$0xff]
      %v345 = vld [vmem:[%s278 + $0x180] sm:$0xff]
      %v346 = vld [vmem:[%s278 + $0x188] sm:$0xff]
      %v347 = vld [vmem:[%s278 + $0x190] sm:$0xff]
      %v348 = vld [vmem:[%s278 + $0x198] sm:$0xff]
      %v349 = vld [vmem:[%s278 + $0x1a0] sm:$0xff]
      %v350 = vld [vmem:[%s278 + $0x1a8] sm:$0xff]
      %v351 = vld [vmem:[%s278 + $0x1b0] sm:$0xff]
      %v352 = vld [vmem:[%s278 + $0x1b8] sm:$0xff]
      %v353 = vld [vmem:[%s278 + $0x1c0] sm:$0xff]
      %v354 = vld [vmem:[%s278 + $0x1c8] sm:$0xff]
      %v355 = vld [vmem:[%s278 + $0x1d0] sm:$0xff]
      %v356 = vld [vmem:[%s278 + $0x1d8] sm:$0xff]
      %v357 = vld [vmem:[%s278 + $0x1e0] sm:$0xff]
      %v358 = vld [vmem:[%s278 + $0x1e8] sm:$0xff]
      %v359 = vld [vmem:[%s278 + $0x1f0] sm:$0xff]
      %v360 = vld [vmem:[%s278 + $0x1f8] sm:$0xff]
      %v361 = vld [vmem:[%s281] sm:$0x1]
      %v363 = vperm.slane %v361, 0
      %366 = vst [vmem:[#allocation1] ss:$4 sm:$0xff] %v296
      %v367 = vld.sshfl [vmem:[#allocation1] sm:$0xff pattern:$0x73625140]
      %v368 = vld.sshfl [vmem:[#allocation1 + $0x8] sm:$0xff pattern:$0x73625140]
      %v369 = vld.sshfl [vmem:[#allocation1 + $0x10] sm:$0xff pattern:$0x73625140]
      %v370 = vld.sshfl [vmem:[#allocation1 + $0x18] sm:$0xff pattern:$0x73625140]
      %375 = vmatpush.msra.mxu0 %v312
      %376 = vmatpush.msra.mxu0 %v311
      %377 = vmatpush.msra.mxu0 %v310
      %378 = vmatpush.msra.mxu0 %v309
      %379 = vmatpush.msra.mxu0 %v308
      %380 = vmatpush.msra.mxu0 %v307
      %381 = vmatpush.msra.mxu0 %v306
      %382 = vmatpush.msra.mxu0 %v305
      %383 = vmatpush.msra.mxu0 %v304
      %384 = vmatpush.msra.mxu0 %v303
      %385 = vmatpush.msra.mxu0 %v302
      %386 = vmatpush.msra.mxu0 %v301
      %387 = vmatpush.msra.mxu0 %v300
      %388 = vmatpush.msra.mxu0 %v299
      %389 = vmatpush.msra.mxu0 %v298
      %390 = vmatpush.msra.mxu0 %v297
      %391 = vmatmul.f32.gmra.mxu0 %v367
      %v392 = vpop.f32.mrf.mxu0
      %v393 = vadd.f32 %v363, %v392
      %394 = vdwg.mxu0
      %395 = vmatpush.msra.mxu0 %v328
      %396 = vmatpush.msra.mxu0 %v327
      %397 = vmatpush.msra.mxu0 %v326
      %398 = vmatpush.msra.mxu0 %v325
      %399 = vmatpush.msra.mxu0 %v324
      %400 = vmatpush.msra.mxu0 %v323
      %401 = vmatpush.msra.mxu0 %v322
      %402 = vmatpush.msra.mxu0 %v321
      %403 = vmatpush.msra.mxu0 %v320
      %404 = vmatpush.msra.mxu0 %v319
      %405 = vmatpush.msra.mxu0 %v318
      %406 = vmatpush.msra.mxu0 %v317
      %407 = vmatpush.msra.mxu0 %v316
      %408 = vmatpush.msra.mxu0 %v315
      %409 = vmatpush.msra.mxu0 %v314
      %410 = vmatpush.msra.mxu0 %v313
      %411 = vmatmul.f32.gmra.mxu0 %v368
      %v412 = vpop.f32.mrf.mxu0
      %v413 = vadd.f32 %v393, %v412
      %414 = vdwg.mxu0
      %415 = vmatpush.msra.mxu0 %v344
      %416 = vmatpush.msra.mxu0 %v343
      %417 = vmatpush.msra.mxu0 %v342
      %418 = vmatpush.msra.mxu0 %v341
      %419 = vmatpush.msra.mxu0 %v340
      %420 = vmatpush.msra.mxu0 %v339
      %421 = vmatpush.msra.mxu0 %v338
      %422 = vmatpush.msra.mxu0 %v337
      %423 = vmatpush.msra.mxu0 %v336
      %424 = vmatpush.msra.mxu0 %v335
      %425 = vmatpush.msra.mxu0 %v334
      %426 = vmatpush.msra.mxu0 %v333
      %427 = vmatpush.msra.mxu0 %v332
      %428 = vmatpush.msra.mxu0 %v331
      %429 = vmatpush.msra.mxu0 %v330
      %430 = vmatpush.msra.mxu0 %v329
      %431 = vmatmul.f32.gmra.mxu0 %v369
      %v432 = vpop.f32.mrf.mxu0
      %v433 = vadd.f32 %v413, %v432
      %434 = vdwg.mxu0
      %435 = vmatpush.msra.mxu0 %v360
      %436 = vmatpush.msra.mxu0 %v359
      %437 = vmatpush.msra.mxu0 %v358
      %438 = vmatpush.msra.mxu0 %v357
      %439 = vmatpush.msra.mxu0 %v356
      %440 = vmatpush.msra.mxu0 %v355
      %441 = vmatpush.msra.mxu0 %v354
      %442 = vmatpush.msra.mxu0 %v353
      %443 = vmatpush.msra.mxu0 %v352
      %444 = vmatpush.msra.mxu0 %v351
      %445 = vmatpush.msra.mxu0 %v350
      %446 = vmatpush.msra.mxu0 %v349
      %447 = vmatpush.msra.mxu0 %v348
      %448 = vmatpush.msra.mxu0 %v347
      %449 = vmatpush.msra.mxu0 %v346
      %450 = vmatpush.msra.mxu0 %v345
      %451 = vmatmul.f32.gmra.mxu0 %v370
      %v452 = vpop.f32.mrf.mxu0
      %v453 = vadd.f32 %v433, %v452
      %454 = vdwg.mxu0
      %v455 = vmax.f32 %v453, 0.0
      %v456 = vld [vmem:[%s286] sm:$0xff]
      %v457 = vld [vmem:[%s286 + $0x8] sm:$0xff]
      %v458 = vld [vmem:[%s286 + $0x10] sm:$0xff]
      %v459 = vld [vmem:[%s286 + $0x18] sm:$0xff]
      %v460 = vld [vmem:[%s286 + $0x20] sm:$0xff]
      %v461 = vld [vmem:[%s286 + $0x28] sm:$0xff]
      %v462 = vld [vmem:[%s286 + $0x30] sm:$0xff]
      %v463 = vld [vmem:[%s286 + $0x38] sm:$0xff]
      %v464 = vld [vmem:[%s286 + $0x40] sm:$0xff]
      %v465 = vld [vmem:[%s286 + $0x48] sm:$0xff]
      %v466 = vld [vmem:[%s286 + $0x50] sm:$0xff]
      %v467 = vld [vmem:[%s286 + $0x58] sm:$0xff]
      %v468 = vld [vmem:[%s286 + $0x60] sm:$0xff]
      %v469 = vld [vmem:[%s286 + $0x68] sm:$0xff]
      %v470 = vld [vmem:[%s286 + $0x70] sm:$0xff]
      %v471 = vld [vmem:[%s286 + $0x78] sm:$0xff]
      %v472 = vld [vmem:[%s286 + $0x80] sm:$0xff]
      %v473 = vld [vmem:[%s286 + $0x88] sm:$0xff]
      %v474 = vld [vmem:[%s286 + $0x90] sm:$0xff]
      %v475 = vld [vmem:[%s286 + $0x98] sm:$0xff]
      %v476 = vld [vmem:[%s286 + $0xa0] sm:$0xff]
      %v477 = vld [vmem:[%s286 + $0xa8] sm:$0xff]
      %v478 = vld [vmem:[%s286 + $0xb0] sm:$0xff]
      %v479 = vld [vmem:[%s286 + $0xb8] sm:$0xff]
      %v480 = vld [vmem:[%s286 + $0xc0] sm:$0xff]
      %v481 = vld [vmem:[%s286 + $0xc8] sm:$0xff]
      %v482 = vld [vmem:[%s286 + $0xd0] sm:$0xff]
      %v483 = vld [vmem:[%s286 + $0xd8] sm:$0xff]
      %v484 = vld [vmem:[%s286 + $0xe0] sm:$0xff]
      %v485 = vld [vmem:[%s286 + $0xe8] sm:$0xff]
      %v486 = vld [vmem:[%s286 + $0xf0] sm:$0xff]
      %v487 = vld [vmem:[%s286 + $0xf8] sm:$0xff]
      %v488 = vld [vmem:[%s286 + $0x100] sm:$0xff]
      %v489 = vld [vmem:[%s286 + $0x108] sm:$0xff]
      %v490 = vld [vmem:[%s286 + $0x110] sm:$0xff]
      %v491 = vld [vmem:[%s286 + $0x118] sm:$0xff]
      %v492 = vld [vmem:[%s286 + $0x120] sm:$0xff]
      %v493 = vld [vmem:[%s286 + $0x128] sm:$0xff]
      %v494 = vld [vmem:[%s286 + $0x130] sm:$0xff]
      %v495 = vld [vmem:[%s286 + $0x138] sm:$0xff]
      %v496 = vld [vmem:[%s286 + $0x140] sm:$0xff]
      %v497 = vld [vmem:[%s286 + $0x148] sm:$0xff]
      %v498 = vld [vmem:[%s286 + $0x150] sm:$0xff]
      %v499 = vld [vmem:[%s286 + $0x158] sm:$0xff]
      %v500 = vld [vmem:[%s286 + $0x160] sm:$0xff]
      %v501 = vld [vmem:[%s286 + $0x168] sm:$0xff]
      %v502 = vld [vmem:[%s286 + $0x170] sm:$0xff]
      %v503 = vld [vmem:[%s286 + $0x178] sm:$0xff]
      %v504 = vld [vmem:[%s286 + $0x180] sm:$0xff]
      %v505 = vld [vmem:[%s286 + $0x188] sm:$0xff]
      %v506 = vld [vmem:[%s286 + $0x190] sm:$0xff]
      %v507 = vld [vmem:[%s286 + $0x198] sm:$0xff]
      %v508 = vld [vmem:[%s286 + $0x1a0] sm:$0xff]
      %v509 = vld [vmem:[%s286 + $0x1a8] sm:$0xff]
      %v510 = vld [vmem:[%s286 + $0x1b0] sm:$0xff]
      %v511 = vld [vmem:[%s286 + $0x1b8] sm:$0xff]
      %v512 = vld [vmem:[%s286 + $0x1c0] sm:$0xff]
      %v513 = vld [vmem:[%s286 + $0x1c8] sm:$0xff]
      %v514 = vld [vmem:[%s286 + $0x1d0] sm:$0xff]
      %v515 = vld [vmem:[%s286 + $0x1d8] sm:$0xff]
      %v516 = vld [vmem:[%s286 + $0x1e0] sm:$0xff]
      %v517 = vld [vmem:[%s286 + $0x1e8] sm:$0xff]
      %v518 = vld [vmem:[%s286 + $0x1f0] sm:$0xff]
      %v519 = vld [vmem:[%s286 + $0x1f8] sm:$0xff]
      %v520 = vld [vmem:[%s290] sm:$0xf]
      %v522 = vperm.slane %v520, 0
      %v523 = vperm.slane %v520, 1
      %v524 = vperm.slane %v520, 2
      %v525 = vperm.slane %v520, 3
      %530 = vmatpush.msra.mxu0 %v516
      %531 = vmatpush.msra.mxu0 %v512
      %532 = vmatpush.msra.mxu0 %v508
      %533 = vmatpush.msra.mxu0 %v504
      %534 = vmatpush.msra.mxu0 %v500
      %535 = vmatpush.msra.mxu0 %v496
      %536 = vmatpush.msra.mxu0 %v492
      %537 = vmatpush.msra.mxu0 %v488
      %538 = vmatpush.msra.mxu0 %v484
      %539 = vmatpush.msra.mxu0 %v480
      %540 = vmatpush.msra.mxu0 %v476
      %541 = vmatpush.msra.mxu0 %v472
      %542 = vmatpush.msra.mxu0 %v468
      %543 = vmatpush.msra.mxu0 %v464
      %544 = vmatpush.msra.mxu0 %v460
      %545 = vmatpush.msra.mxu0 %v456
      %546 = vmatmul.f32.gmra.mxu0 %v455
      %v547 = vpop.f32.mrf.mxu0
      %v548 = vadd.f32 %v522, %v547
      %549 = vdwg.mxu0
      %550 = vmatpush.msra.mxu0 %v517
      %551 = vmatpush.msra.mxu0 %v513
      %552 = vmatpush.msra.mxu0 %v509
      %553 = vmatpush.msra.mxu0 %v505
      %554 = vmatpush.msra.mxu0 %v501
      %555 = vmatpush.msra.mxu0 %v497
      %556 = vmatpush.msra.mxu0 %v493
      %557 = vmatpush.msra.mxu0 %v489
      %558 = vmatpush.msra.mxu0 %v485
      %559 = vmatpush.msra.mxu0 %v481
      %560 = vmatpush.msra.mxu0 %v477
      %561 = vmatpush.msra.mxu0 %v473
      %562 = vmatpush.msra.mxu0 %v469
      %563 = vmatpush.msra.mxu0 %v465
      %564 = vmatpush.msra.mxu0 %v461
      %565 = vmatpush.msra.mxu0 %v457
      %566 = vmatmul.f32.gmra.mxu0 %v455
      %v567 = vpop.f32.mrf.mxu0
      %v568 = vadd.f32 %v523, %v567
      %569 = vdwg.mxu0
      %570 = vmatpush.msra.mxu0 %v518
      %571 = vmatpush.msra.mxu0 %v514
      %572 = vmatpush.msra.mxu0 %v510
      %573 = vmatpush.msra.mxu0 %v506
      %574 = vmatpush.msra.mxu0 %v502
      %575 = vmatpush.msra.mxu0 %v498
      %576 = vmatpush.msra.mxu0 %v494
      %577 = vmatpush.msra.mxu0 %v490
      %578 = vmatpush.msra.mxu0 %v486
      %579 = vmatpush.msra.mxu0 %v482
      %580 = vmatpush.msra.mxu0 %v478
      %581 = vmatpush.msra.mxu0 %v474
      %582 = vmatpush.msra.mxu0 %v470
      %583 = vmatpush.msra.mxu0 %v466
      %584 = vmatpush.msra.mxu0 %v462
      %585 = vmatpush.msra.mxu0 %v458
      %586 = vmatmul.f32.gmra.mxu0 %v455
      %v587 = vpop.f32.mrf.mxu0
      %v588 = vadd.f32 %v524, %v587
      %589 = vdwg.mxu0
      %590 = vmatpush.msra.mxu0 %v519
      %591 = vmatpush.msra.mxu0 %v515
      %592 = vmatpush.msra.mxu0 %v511
      %593 = vmatpush.msra.mxu0 %v507
      %594 = vmatpush.msra.mxu0 %v503
      %595 = vmatpush.msra.mxu0 %v499
      %596 = vmatpush.msra.mxu0 %v495
      %597 = vmatpush.msra.mxu0 %v491
      %598 = vmatpush.msra.mxu0 %v487
      %599 = vmatpush.msra.mxu0 %v483
      %600 = vmatpush.msra.mxu0 %v479
      %601 = vmatpush.msra.mxu0 %v475
      %602 = vmatpush.msra.mxu0 %v471
      %603 = vmatpush.msra.mxu0 %v467
      %604 = vmatpush.msra.mxu0 %v463
      %605 = vmatpush.msra.mxu0 %v459
      %606 = vmatmul.f32.gmra.mxu0 %v455
      %v607 = vpop.f32.mrf.mxu0
      %v608 = vadd.f32 %v525, %v607
      %609 = vdwg.mxu0
      %v614 = vrot.slane %v568, 6
      %v615 = vrot.slane %v588, 4
      %v616 = vrot.slane %v608, 2
      %vm617 = vcmask 1041408
      %v618 = vsel %vm617, %v548, %v614
      %vm619 = vcmask 1045508
      %v620 = vsel %vm619, %v615, %v616
      %vm621 = vcmask 1043456
      %v622 = vsel %vm621, %v618, %v620
      %624 = vst [vmem:[%s295] sm:$0xff] %v622
      %p625 = scmp.lt.s32.totalorder %s16, 1
      %s626 = scalar_select %p625, %s16, 1
      %s627 = smul.addr %s626, 4
      %s628 = smul.addr %s627, 2
      %s629 = scalar_lea.vmem %s5, %s628
      // Predicated region
      $region41: #{path_attention_forward.4} parent=39 // pred_check
        %p630 = pneg %p164
      $region42: #{path_attention_forward.4} parent=39 // pred_check_branch
        %632 = sbr.rel (%p630) target = $region44
      $region43: #{path_attention_forward.4} parent=39 // pred_region
        _
      $region44: #{path_attention_forward.4} parent=39 // pred_fallthru
        _
    $region40: #{path_attention_forward.4} parent=5 // pred_fallthru
      _
    %p633 = scmp.le.s32.totalorder 2, %s11
    // Predicated region
    $region45: #{path_attention_forward.4} parent=5 // pred_check
      %p634 = pneg %p633
    $region46: #{path_attention_forward.4} parent=5 // pred_check_branch
      %636 = sbr.rel (%p634) target = $region48
    $region47: #{path_attention_forward.4} parent=5 // pred_region
      %s637 = ssub.s32 %s11, 2
      // Predicated region
      $region49: #{path_attention_forward.4} parent=47 // pred_check
        %p638 = pneg %p170
      $region50: #{path_attention_forward.4} parent=47 // pred_check_branch
        %640 = sbr.rel (%p638) target = $region52
      $region51: #{path_attention_forward.4} parent=47 // pred_region
        %p641 = scmp.lt.s32.totalorder %s17, 1
        %s642 = scalar_select %p641, %s17, 1
        %s643 = smul.addr %s642, 4
        %s644 = smul.addr %s643, 2
        %s645 = scalar_lea.vmem %s5, %s644
      $region52: #{path_attention_forward.4} parent=47 // pred_fallthru
        _
    $region48: #{path_attention_forward.4} parent=5 // pred_fallthru
      _
  $region6: #{path_attention_forward.4} parent=0 // loop_footer
    %s15 = sadd.s32 1, %s11
  $region7: #{path_attention_forward.4} parent=0 // loop_footer_branch
    %10 = sbr.rel target = $region3
  $region8: #{path_attention_forward.4} parent=0 // loop_exit
    _

// kernel: path_attention_forward.5
$region0: #{path_attention_forward.5}
  #allocation0 [shape = 'u32[]', space=smem, size = 0x4, offset = 0x4, fixed_abs, tag = 'smem constant byte address 0x4 - core index']
  #allocation1 [shape = 'u32[72,128]{1,0:T(1,128)}', space=vmem, size = 0x9000, scoped, tag = 'internal scratch']
  %s0 = inlined_call_operand.vmem [shape: f32[2,4,16,8], index: 0, kind: input, shape index: {}]
  %s1 = inlined_call_operand.vmem [shape: f32[2,4,16,8], index: 1, kind: input, shape index: {}]
  %s2 = inlined_call_operand.vmem [shape: f32[2,4,16,8], index: 2, kind: input, shape index: {}]
  %s3 = inlined_call_operand.vmem [shape: f32[4,8,128], index: 3, kind: input, shape index: {}]
  %s4 = inlined_call_operand.vmem [shape: f32[1,128], index: 4, kind: input, shape index: {}]
  %s5 = inlined_call_operand.hbm [shape: f32[2,16,128], index: 5, kind: output, shape index: {0}]
  %s6 = inlined_call_operand.hbm [shape: f32[2,4,16,16], index: 6, kind: output, shape index: {1}]
  %7 = xla_tuple %s5, %s6
  %s8 = sld [smem:[#allocation0]]
  $region61: #{path_attention_forward.5} parent=0
    _
  %s10 = ssub.s32 1, %s8
  %s11 = scalar_select 0, %s10, %s8
  $region1: #{path_attention_forward.5} parent=0
    #allocation2 [shape = 'u8[16384]{0}', space=vmem, size = 0x4000, scoped, tag = 'output window, operand 0']
    #allocation3 [shape = 's32[2]{0}', space=sflag, size = 0x8, scoped, tag = 'scoped memory for path_attention_forward.5']
    #allocation4 [shape = 'u8[65536]{0}', space=vmem, size = 0x10000, scoped, tag = 'output window, operand 1']
    #allocation5 [shape = 's32[2]{0}', space=sflag, size = 0x8, scoped, tag = 'scoped memory for path_attention_forward.5']
    %12 = vsyncpa [#allocation3], 0
    %s13 = scalar_lea.sflag [#allocation3], 1
    %14 = vsyncpa %s13, 0
    %15 = vsyncpa [#allocation5], 0
    %s16 = scalar_lea.sflag [#allocation5], 1
    %17 = vsyncpa %s16, 0
    loop: start=0, step=1, limit=4
    $region2: #{path_attention_forward.5} parent=1 // loop_pre_header
      _
    $region3: #{path_attention_forward.5} parent=1 // loop_header
      %s19 = sphi 0, %s23
      %p20 = scmp.ge.s32.totalorder %s19, 4
      %s29 = sphi 0, %s31
      %s32 = sphi 0, %s29
      %s33 = sphi 0, %s32
      %s49 = sphi 0, %s33
      %s55 = sphi 0, %s57
      %s58 = sphi 0, %s55
      %s59 = sphi 0, %s58
      %s75 = sphi 0, %s59
      %s81 = sphi 0, %s83
      %s84 = sphi 0, %s81
      %s85 = sphi 0, %s84
      %s101 = sphi 0, %s85
      %s105 = sphi 0, %s105
      %s107 = sphi 0, %s105
      %s108 = sphi 0, %s107
      %s122 = sphi 0, %s108
      %s126 = sphi 0, %s126
      %s128 = sphi 0, %s126
      %s129 = sphi 0, %s128
      %s143 = sphi 0, %s129
      %s149 = sphi 0, %s151
      %s152 = sphi 0, %s149
      %s153 = sphi 0, %s152
      %s169 = sphi 0, %s153
      %s175 = sphi 0, %s177
      %s178 = sphi 0, %s175
      %s179 = sphi 0, %s178
      %s195 = sphi 0, %s179
    $region4: #{path_attention_forward.5} parent=1 // loop_header_branch
      %22 = sbr.rel (%p20) target = $region8
    $region5: #{path_attention_forward.5} parent=1 // loop_body
      %s24 = ssub.s32 %s19, 1
      %s25 = ssub.s32 %s19, 2
      %s26 = sadd.s32 %s19, 1
      %s27 = ssub.s32 %s19, %s26
      %p28 = scmp.eq.s32.totalorder %s27, 0
      %s30 = sadd.s32 %s29, 1
      %s31 = scalar_select %p28, %s29, %s30
      %p34 = pneg %p28
      %p35 = scmp.eq.s32.totalorder %s19, 1
      %p36 = por %p34, %p35
      %p37 = scmp.ne.s32.totalorder %s29, %s32
      %p38 = scmp.eq.s32.totalorder %s19, 0
      %p39 = por %p37, %p38
      %p40 = scmp.ne.s32.totalorder %s29, %s32
      %p41 = scmp.eq.s32.totalorder %s24, 1
      %p42 = por %p40, %p41
      %p43 = scmp.ne.s32.totalorder %s32, %s33
      %p44 = scmp.eq.s32.totalorder %s24, 0
      %p45 = por %p43, %p44
      %p46 = scmp.ne.s32.totalorder %s32, %s33
      %p47 = scmp.eq.s32.totalorder %s25, 1
      %p48 = por %p46, %p47
      %p50 = scmp.ne.s32.totalorder %s33, %s49
      %p51 = scmp.eq.s32.totalorder %s25, 0
      %p52 = por %p50, %p51
      %s53 = ssub.s32 %s19, %s26
      %p54 = scmp.eq.s32.totalorder %s53, 0
      %s56 = sadd.s32 %s55, 1
      %s57 = scalar_select %p54, %s55, %s56
      %p60 = pneg %p54
      %p61 = scmp.eq.s32.totalorder %s19, 1
      %p62 = por %p60, %p61
      %p63 = scmp.ne.s32.totalorder %s55, %s58
      %p64 = scmp.eq.s32.totalorder %s19, 0
      %p65 = por %p63, %p64
      %p66 = scmp.ne.s32.totalorder %s55, %s58
      %p67 = scmp.eq.s32.totalorder %s24, 1
      %p68 = por %p66, %p67
      %p69 = scmp.ne.s32.totalorder %s58, %s59
      %p70 = scmp.eq.s32.totalorder %s24, 0
      %p71 = por %p69, %p70
      %p72 = scmp.ne.s32.totalorder %s58, %s59
      %p73 = scmp.eq.s32.totalorder %s25, 1
      %p74 = por %p72, %p73
      %p76 = scmp.ne.s32.totalorder %s59, %s75
      %p77 = scmp.eq.s32.totalorder %s25, 0
      %p78 = por %p76, %p77
      %s79 = ssub.s32 %s19, %s26
      %p80 = scmp.eq.s32.totalorder %s79, 0
      %s82 = sadd.s32 %s81, 1
      %s83 = scalar_select %p80, %s81, %s82
      %p86 = pneg %p80
      %p87 = scmp.eq.s32.totalorder %s19, 1
      %p88 = por %p86, %p87
      %p89 = scmp.ne.s32.totalorder %s81, %s84
      %p90 = scmp.eq.s32.totalorder %s19, 0
      %p91 = por %p89, %p90
      %p92 = scmp.ne.s32.totalorder %s81, %s84
      %p93 = scmp.eq.s32.totalorder %s24, 1
      %p94 = por %p92, %p93
      %p95 = scmp.ne.s32.totalorder %s84, %s85
      %p96 = scmp.eq.s32.totalorder %s24, 0
      %p97 = por %p95, %p96
      %p98 = scmp.ne.s32.totalorder %s84, %s85
      %p99 = scmp.eq.s32.totalorder %s25, 1
      %p100 = por %p98, %p99
      %p102 = scmp.ne.s32.totalorder %s85, %s101
      %p103 = scmp.eq.s32.totalorder %s25, 0
      %p104 = por %p102, %p103
      %s106 = sadd.s32 %s105, 1
      %p109 = scmp.eq.s32.totalorder %s19, 1
      %p110 = scmp.ne.s32.totalorder %s105, %s107
      %p111 = scmp.eq.s32.totalorder %s19, 0
      %p112 = por %p110, %p111
      %p113 = scmp.ne.s32.totalorder %s105, %s107
      %p114 = scmp.eq.s32.totalorder %s24, 1
      %p115 = por %p113, %p114
      %p116 = scmp.ne.s32.totalorder %s107, %s108
      %p117 = scmp.eq.s32.totalorder %s24, 0
      %p118 = por %p116, %p117
      %p119 = scmp.ne.s32.totalorder %s107, %s108
      %p120 = scmp.eq.s32.totalorder %s25, 1
      %p121 = por %p119, %p120
      %p123 = scmp.ne.s32.totalorder %s108, %s122
      %p124 = scmp.eq.s32.totalorder %s25, 0
      %p125 = por %p123, %p124
      %s127 = sadd.s32 %s126, 1
      %p130 = scmp.eq.s32.totalorder %s19, 1
      %p131 = scmp.ne.s32.totalorder %s126, %s128
      %p132 = scmp.eq.s32.totalorder %s19, 0
      %p133 = por %p131, %p132
      %p134 = scmp.ne.s32.totalorder %s126, %s128
      %p135 = scmp.eq.s32.totalorder %s24, 1
      %p136 = por %p134, %p135
      %p137 = scmp.ne.s32.totalorder %s128, %s129
      %p138 = scmp.eq.s32.totalorder %s24, 0
      %p139 = por %p137, %p138
      %p140 = scmp.ne.s32.totalorder %s128, %s129
      %p141 = scmp.eq.s32.totalorder %s25, 1
      %p142 = por %p140, %p141
      %p144 = scmp.ne.s32.totalorder %s129, %s143
      %p145 = scmp.eq.s32.totalorder %s25, 0
      %p146 = por %p144, %p145
      %s147 = ssub.s32 %s19, %s26
      %p148 = scmp.eq.s32.totalorder %s147, 0
      %s150 = sadd.s32 %s149, 1
      %s151 = scalar_select %p148, %s149, %s150
      %p154 = pneg %p148
      %p155 = scmp.eq.s32.totalorder %s19, 1
      %p156 = por %p154, %p155
      %p157 = scmp.ne.s32.totalorder %s149, %s152
      %p158 = scmp.eq.s32.totalorder %s19, 0
      %p159 = por %p157, %p158
      %p160 = scmp.ne.s32.totalorder %s149, %s152
      %p161 = scmp.eq.s32.totalorder %s24, 1
      %p162 = por %p160, %p161
      %p163 = scmp.ne.s32.totalorder %s152, %s153
      %p164 = scmp.eq.s32.totalorder %s24, 0
      %p165 = por %p163, %p164
      %p166 = scmp.ne.s32.totalorder %s152, %s153
      %p167 = scmp.eq.s32.totalorder %s25, 1
      %p168 = por %p166, %p167
      %p170 = scmp.ne.s32.totalorder %s153, %s169
      %p171 = scmp.eq.s32.totalorder %s25, 0
      %p172 = por %p170, %p171
      %s173 = ssub.s32 %s19, %s26
      %p174 = scmp.eq.s32.totalorder %s173, 0
      %s176 = sadd.s32 %s175, 1
      %s177 = scalar_select %p174, %s175, %s176
      %p180 = pneg %p174
      %p181 = scmp.eq.s32.totalorder %s19, 1
      %p182 = por %p180, %p181
      %p183 = scmp.ne.s32.totalorder %s175, %s178
      %p184 = scmp.eq.s32.totalorder %s19, 0
      %p185 = por %p183, %p184
      %p186 = scmp.ne.s32.totalorder %s175, %s178
      %p187 = scmp.eq.s32.totalorder %s24, 1
      %p188 = por %p186, %p187
      %p189 = scmp.ne.s32.totalorder %s178, %s179
      %p190 = scmp.eq.s32.totalorder %s24, 0
      %p191 = por %p189, %p190
      %p192 = scmp.ne.s32.totalorder %s178, %s179
      %p193 = scmp.eq.s32.totalorder %s25, 1
      %p194 = por %p192, %p193
      %p196 = scmp.ne.s32.totalorder %s179, %s195
      %p197 = scmp.eq.s32.totalorder %s25, 0
      %p198 = por %p196, %p197
      %p199 = scmp.le.s32.totalorder 1, %s19
      %p200 = scmp.lt.s32.totalorder %s19, 3
      %p201 = pnand %p199, %p200
      %p202 = pneg %p201
      // Predicated region
      $region9: #{path_attention_forward.5} parent=5 // pred_check
        _
      $region10: #{path_attention_forward.5} parent=5 // pred_check_branch
        %204 = sbr.rel (%p201) target = $region12
      $region11: #{path_attention_forward.5} parent=5 // pred_region
        %s205 = ssub.s32 %s19, 1
        // Predicated region
        $region13: #{path_attention_forward.5} parent=11 // pred_check
          %p206 = pneg %p118
        $region14: #{path_attention_forward.5} parent=11 // pred_check_branch
          %208 = sbr.rel (%p206) target = $region16
        $region15: #{path_attention_forward.5} parent=11 // pred_region
          _
        $region16: #{path_attention_forward.5} parent=11 // pred_fallthru
          _
        // Predicated region
        $region17: #{path_attention_forward.5} parent=11 // pred_check
          %p209 = pneg %p139
        $region18: #{path_attention_forward.5} parent=11 // pred_check_branch
          %211 = sbr.rel (%p209) target = $region20
        $region19: #{path_attention_forward.5} parent=11 // pred_region
          _
        $region20: #{path_attention_forward.5} parent=11 // pred_fallthru
          _
      $region12: #{path_attention_forward.5} parent=5 // pred_fallthru
        _
      %p212 = scmp.lt.s32.totalorder %s19, 2
      // Predicated region
      $region21: #{path_attention_forward.5} parent=5 // pred_check
        %p213 = pneg %p212
      $region22: #{path_attention_forward.5} parent=5 // pred_check_branch
        %215 = sbr.rel (%p213) target = $region24
      $region23: #{path_attention_forward.5} parent=5 // pred_region
        // Predicated region
        $region25: #{path_attention_forward.5} parent=23 // pred_check
          %p216 = pneg %p39
        $region26: #{path_attention_forward.5} parent=23 // pred_check_branch
          %218 = sbr.rel (%p216) target = $region28
        $region27: #{path_attention_forward.5} parent=23 // pred_region
          %p219 = scmp.lt.s32.totalorder %s19, 1
          %s220 = scalar_select %p219, %s19, 1
          %s221 = smul.addr %s220, 8
          %s222 = smul.addr %s221, 8
          %s223 = scalar_lea.vmem %s0, %s222
        $region28: #{path_attention_forward.5} parent=23 // pred_fallthru
          _
        // Predicated region
        $region29: #{path_attention_forward.5} parent=23 // pred_check
          %p224 = pneg %p65
        $region30: #{path_attention_forward.5} parent=23 // pred_check_branch
          %226 = sbr.rel (%p224) target = $region32
        $region31: #{path_attention_forward.5} parent=23 // pred_region
          %p227 = scmp.lt.s32.totalorder %s19, 1
          %s228 = scalar_select %p227, %s19, 1
          %s229 = smul.addr %s228, 8
          %s230 = smul.addr %s229, 8
          %s231 = scalar_lea.vmem %s1, %s230
        $region32: #{path_attention_forward.5} parent=23 // pred_fallthru
          _
        // Predicated region
        $region33: #{path_attention_forward.5} parent=23 // pred_check
          %p232 = pneg %p91
        $region34: #{path_attention_forward.5} parent=23 // pred_check_branch
          %234 = sbr.rel (%p232) target = $region36
        $region35: #{path_attention_forward.5} parent=23 // pred_region
          %p235 = scmp.lt.s32.totalorder %s19, 1
          %s236 = scalar_select %p235, %s19, 1
          %s237 = smul.addr %s236, 8
          %s238 = smul.addr %s237, 8
          %s239 = scalar_lea.vmem %s2, %s238
        $region36: #{path_attention_forward.5} parent=23 // pred_fallthru
          _
      $region24: #{path_attention_forward.5} parent=5 // pred_fallthru
        _
      %p240 = scmp.le.s32.totalorder 1, %s19
      %p241 = scmp.lt.s32.totalorder %s19, 3
      %p242 = pnand %p240, %p241
      %p243 = pneg %p242
      // Predicated region
      $region37: #{path_attention_forward.5} parent=5 // pred_check
        _
      $region38: #{path_attention_forward.5} parent=5 // pred_check_branch
        %245 = sbr.rel (%p242) target = $region40
      $region39: #{path_attention_forward.5} parent=5 // pred_region
        %s246 = ssub.s32 %s19, 1
        %p247 = scmp.lt.s32.totalorder %s24, 1
        %s248 = scalar_select %p247, %s24, 1
        %s249 = smul.addr %s248, 8
        %s250 = smul.addr %s249, 8
        %s251 = scalar_lea.vmem %s0, %s250
        %p252 = pneg %p45
        %p253 = pneg %p42
        %p254 = scmp.lt.s32.totalorder %s24, 1
        %s255 = scalar_select %p254, %s24, 1
        %s256 = smul.addr %s255, 8
        %s257 = smul.addr %s256, 8
        %s258 = scalar_lea.vmem %s1, %s257
        %p259 = pneg %p71
        %p260 = pneg %p68
        %p261 = scmp.lt.s32.totalorder %s24, 1
        %s262 = scalar_select %p261, %s24, 1
        %s263 = smul.addr %s262, 8
        %s264 = smul.addr %s263, 8
        %s265 = scalar_lea.vmem %s2, %s264
        %p266 = pneg %p97
        %p267 = pneg %p94
        %p268 = pneg %p118
        %p269 = pneg %p115
        %p270 = pneg %p139
        %p271 = pneg %p136
        %p272 = pneg %p165
        %p273 = pneg %p162
        %s274 = sand.u32 %s152, 1
        %s275 = scalar_lea.sflag [#allocation3], %s274
        %s276 = sand.u32 %s152, 1
        %s277 = smul.addr %s276, 16
        %s278 = scalar_lea.vmem [#allocation2], %s277
        %p279 = pneg %p191
        %p280 = pneg %p188
        %s281 = sand.u32 %s178, 1
        %s282 = scalar_lea.sflag [#allocation5], %s281
        %s283 = sand.u32 %s178, 1
        %s284 = smul.addr %s283, 64
        %s285 = scalar_lea.vmem [#allocation4], %s284
        %p286 = scmp.lt.s32.totalorder %s24, 1
        %s287 = scalar_select %p286, %s24, 1
        %s288 = smul.addr %s287, 8
        %s289 = smul.addr %s288, 8
        %s290 = scalar_lea.vmem %s0, %s289
        %p291 = scmp.lt.s32.totalorder %s24, 1
        %s292 = scalar_select %p291, %s24, 1
        %s293 = smul.addr %s292, 8
        %s294 = smul.addr %s293, 8
        %s295 = scalar_lea.vmem %s1, %s294
        %p296 = scmp.lt.s32.totalorder %s24, 1
        %s297 = scalar_select %p296, %s24, 1
        %s298 = smul.addr %s297, 8
        %s299 = smul.addr %s298, 8
        %s300 = scalar_lea.vmem %s2, %s299
        %v301 = vld [vmem:[%s290] sm:$0xff]
        %v302 = vld [vmem:[%s290 + $0x8] sm:$0xff]
        %v303 = vld [vmem:[%s290 + $0x10] sm:$0xff]
        %v304 = vld [vmem:[%s290 + $0x18] sm:$0xff]
        %v305 = vld [vmem:[%s290 + $0x20] sm:$0xff]
        %v306 = vld [vmem:[%s290 + $0x28] sm:$0xff]
        %v307 = vld [vmem:[%s290 + $0x30] sm:$0xff]
        %v308 = vld [vmem:[%s290 + $0x38] sm:$0xff]
        %v309 = vmul.f32 %v301, 0.35355338
        %v310 = vmul.f32 %v302, 0.35355338
        %v311 = vmul.f32 %v303, 0.35355338
        %v312 = vmul.f32 %v304, 0.35355338
        %v313 = vmul.f32 %v305, 0.35355338
        %v314 = vmul.f32 %v306, 0.35355338
        %v315 = vmul.f32 %v307, 0.35355338
        %v316 = vmul.f32 %v308, 0.35355338
        %v317 = vld [vmem:[%s295] sm:$0xff]
        %v318 = vld [vmem:[%s295 + $0x8] sm:$0xff]
        %v319 = vld [vmem:[%s295 + $0x10] sm:$0xff]
        %v320 = vld [vmem:[%s295 + $0x18] sm:$0xff]
        %v321 = vld [vmem:[%s295 + $0x20] sm:$0xff]
        %v322 = vld [vmem:[%s295 + $0x28] sm:$0xff]
        %v323 = vld [vmem:[%s295 + $0x30] sm:$0xff]
        %v324 = vld [vmem:[%s295 + $0x38] sm:$0xff]
        %v325 = vld [vmem:[%s300] sm:$0xff]
        %v326 = vld [vmem:[%s300 + $0x8] sm:$0xff]
        %v327 = vld [vmem:[%s300 + $0x10] sm:$0xff]
        %v328 = vld [vmem:[%s300 + $0x18] sm:$0xff]
        %v329 = vld [vmem:[%s300 + $0x20] sm:$0xff]
        %v330 = vld [vmem:[%s300 + $0x28] sm:$0xff]
        %v331 = vld [vmem:[%s300 + $0x30] sm:$0xff]
        %v332 = vld [vmem:[%s300 + $0x38] sm:$0xff]
        %vm333 = vcmask 64512
        %v335 = vsel %vm333, %v309, 0
        %v338 = vsel %vm333, %v310, 0
        %v341 = vsel %vm333, %v317, 0
        %v344 = vsel %vm333, %v318, 0
        %346 = vmatpush.xpose.msra.mxu0 0.0
        %347 = vmatpush.xpose.msra.mxu0 0.0
        %348 = vmatpush.xpose.msra.mxu0 0.0
        %349 = vmatpush.xpose.msra.mxu0 0.0
        %350 = vmatpush.xpose.msra.mxu0 0.0
        %351 = vmatpush.xpose.msra.mxu0 0.0
        %352 = vmatpush.xpose.msra.mxu0 0.0
        %353 = vmatpush.xpose.msra.mxu0 0.0
        %354 = vmatpush.xpose.msra.mxu0 0.0
        %355 = vmatpush.xpose.msra.mxu0 0.0
        %356 = vmatpush.xpose.msra.mxu0 0.0
        %357 = vmatpush.xpose.msra.mxu0 0.0
        %358 = vmatpush.xpose.msra.mxu0 0.0
        %359 = vmatpush.xpose.msra.mxu0 0.0
        %360 = vmatpush.xpose.msra.mxu0 %v344
        %361 = vmatpush.xpose.msra.mxu0 %v341
        %362 = vmatmul.f32.gmra.mxu0 %v335
        %v363 = vpop.f32.mrf.mxu0
        %v364 = vadd.f32 0.0, %v363
        %365 = vmatmul.f32.gmra.mxu0 %v338
        %v366 = vpop.f32.mrf.mxu0
        %v367 = vadd.f32 0.0, %v366
        %368 = vdwg.mxu0
        %v370 = vsel %vm333, %v311, 0
        %v373 = vsel %vm333, %v312, 0
        %v376 = vsel %vm333, %v319, 0
        %v379 = vsel %vm333, %v320, 0
        %381 = vmatpush.xpose.msra.mxu0 0.0
        %382 = vmatpush.xpose.msra.mxu0 0.0
        %383 = vmatpush.xpose.msra.mxu0 0.0
        %384 = vmatpush.xpose.msra.mxu0 0.0
        %385 = vmatpush.xpose.msra.mxu0 0.0
        %386 = vmatpush.xpose.msra.mxu0 0.0
        %387 = vmatpush.xpose.msra.mxu0 0.0
        %388 = vmatpush.xpose.msra.mxu0 0.0
        %389 = vmatpush.xpose.msra.mxu0 0.0
        %390 = vmatpush.xpose.msra.mxu0 0.0
        %391 = vmatpush.xpose.msra.mxu0 0.0
        %392 = vmatpush.xpose.msra.mxu0 0.0
        %393 = vmatpush.xpose.msra.mxu0 0.0
        %394 = vmatpush.xpose.msra.mxu0 0.0
        %395 = vmatpush.xpose.msra.mxu0 %v379
        %396 = vmatpush.xpose.msra.mxu0 %v376
        %397 = vmatmul.f32.gmra.mxu0 %v370
        %v398 = vpop.f32.mrf.mxu0
        %v399 = vadd.f32 0.0, %v398
        %400 = vmatmul.f32.gmra.mxu0 %v373
        %v401 = vpop.f32.mrf.mxu0
        %v402 = vadd.f32 0.0, %v401
        %403 = vdwg.mxu0
        %v405 = vsel %vm333, %v313, 0
        %v408 = vsel %vm333, %v314, 0
        %v411 = vsel %vm333, %v321, 0
        %v414 = vsel %vm333, %v322, 0
        %416 = vmatpush.xpose.msra.mxu0 0.0
        %417 = vmatpush.xpose.msra.mxu0 0.0
        %418 = vmatpush.xpose.msra.mxu0 0.0
        %419 = vmatpush.xpose.msra.mxu0 0.0
        %420 = vmatpush.xpose.msra.mxu0 0.0
        %421 = vmatpush.xpose.msra.mxu0 0.0
        %422 = vmatpush.xpose.msra.mxu0 0.0
        %423 = vmatpush.xpose.msra.mxu0 0.0
        %424 = vmatpush.xpose.msra.mxu0 0.0
        %425 = vmatpush.xpose.msra.mxu0 0.0
        %426 = vmatpush.xpose.msra.mxu0 0.0
        %427 = vmatpush.xpose.msra.mxu0 0.0
        %428 = vmatpush.xpose.msra.mxu0 0.0
        %429 = vmatpush.xpose.msra.mxu0 0.0
        %430 = vmatpush.xpose.msra.mxu0 %v414
        %431 = vmatpush.xpose.msra.mxu0 %v411
        %432 = vmatmul.f32.gmra.mxu0 %v405
        %v433 = vpop.f32.mrf.mxu0
        %v434 = vadd.f32 0.0, %v433
        %435 = vmatmul.f32.gmra.mxu0 %v408
        %v436 = vpop.f32.mrf.mxu0
        %v437 = vadd.f32 0.0, %v436
        %438 = vdwg.mxu0
        %v440 = vsel %vm333, %v315, 0
        %v443 = vsel %vm333, %v316, 0
        %v446 = vsel %vm333, %v323, 0
        %v449 = vsel %vm333, %v324, 0
        %451 = vmatpush.xpose.msra.mxu0 0.0
        %452 = vmatpush.xpose.msra.mxu0 0.0
        %453 = vmatpush.xpose.msra.mxu0 0.0
        %454 = vmatpush.xpose.msra.mxu0 0.0
        %455 = vmatpush.xpose.msra.mxu0 0.0
        %456 = vmatpush.xpose.msra.mxu0 0.0
        %457 = vmatpush.xpose.msra.mxu0 0.0
        %458 = vmatpush.xpose.msra.mxu0 0.0
        %459 = vmatpush.xpose.msra.mxu0 0.0
        %460 = vmatpush.xpose.msra.mxu0 0.0
        %461 = vmatpush.xpose.msra.mxu0 0.0
        %462 = vmatpush.xpose.msra.mxu0 0.0
        %463 = vmatpush.xpose.msra.mxu0 0.0
        %464 = vmatpush.xpose.msra.mxu0 0.0
        %465 = vmatpush.xpose.msra.mxu0 %v449
        %466 = vmatpush.xpose.msra.mxu0 %v446
        %467 = vmatmul.f32.gmra.mxu0 %v440
        %v468 = vpop.f32.mrf.mxu0
        %v469 = vadd.f32 0.0, %v468
        %470 = vmatmul.f32.gmra.mxu0 %v443
        %v471 = vpop.f32.mrf.mxu0
        %v472 = vadd.f32 0.0, %v471
        %473 = vdwg.mxu0
        %vm474 = vcmask 130048
        %v475 = vsel %vm474, %v364, -inf
        %476 = vmax.xlane.f32.xlu0 %v475
        %v477 = vpop.xlane.xlu0 %476
        %v478 = vsel %vm474, %v367, -inf
        %479 = vmax.xlane.f32.xlu0 %v478
        %v480 = vpop.xlane.xlu0 %479
        %v481 = vsel %vm474, %v399, -inf
        %482 = vmax.xlane.f32.xlu0 %v481
        %v483 = vpop.xlane.xlu0 %482
        %v484 = vsel %vm474, %v402, -inf
        %485 = vmax.xlane.f32.xlu0 %v484
        %v486 = vpop.xlane.xlu0 %485
        %v487 = vsel %vm474, %v434, -inf
        %488 = vmax.xlane.f32.xlu0 %v487
        %v489 = vpop.xlane.xlu0 %488
        %v490 = vsel %vm474, %v437, -inf
        %491 = vmax.xlane.f32.xlu0 %v490
        %v492 = vpop.xlane.xlu0 %491
        %v493 = vsel %vm474, %v469, -inf
        %494 = vmax.xlane.f32.xlu0 %v493
        %v495 = vpop.xlane.xlu0 %494
        %v496 = vsel %vm474, %v472, -inf
        %497 = vmax.xlane.f32.xlu0 %v496
        %v498 = vpop.xlane.xlu0 %497
        %v499 = vsub.f32 %v364, %v477
        %v500 = vsub.f32 %v367, %v480
        %v501 = vsub.f32 %v399, %v483
        %v502 = vsub.f32 %v402, %v486
        %v503 = vsub.f32 %v434, %v489
        %v504 = vsub.f32 %v437, %v492
        %v505 = vsub.f32 %v469, %v495
        %v506 = vsub.f32 %v472, %v498
        %v507 = vmul.f32 %v499, 1.442695
        %v508 = vpow.pop %v507
        %v509 = vmul.f32 %v500, 1.442695
        %v510 = vpow.pop %v509
        %v511 = vmul.f32 %v501, 1.442695
        %v512 = vpow.pop %v511
        %v513 = vmul.f32 %v502, 1.442695
        %v514 = vpow.pop %v513
        %v515 = vmul.f32 %v503, 1.442695
        %v516 = vpow.pop %v515
        %v517 = vmul.f32 %v504, 1.442695
        %v518 = vpow.pop %v517
        %v519 = vmul.f32 %v505, 1.442695
        %v520 = vpow.pop %v519
        %v521 = vmul.f32 %v506, 1.442695
        %v522 = vpow.pop %v521
        %v523 = vsel %vm474, %v508, 0.0
        %524 = vadd.xlane.f32.xlu0 %v523
        %v525 = vpop.xlane.xlu0 %524
        %v526 = vsel %vm474, %v510, 0.0
        %527 = vadd.xlane.f32.xlu0 %v526
        %v528 = vpop.xlane.xlu0 %527
        %v529 = vsel %vm474, %v512, 0.0
        %530 = vadd.xlane.f32.xlu0 %v529
        %v531 = vpop.xlane.xlu0 %530
        %v532 = vsel %vm474, %v514, 0.0
        %533 = vadd.xlane.f32.xlu0 %v532
        %v534 = vpop.xlane.xlu0 %533
        %v535 = vsel %vm474, %v516, 0.0
        %536 = vadd.xlane.f32.xlu0 %v535
        %v537 = vpop.xlane.xlu0 %536
        %v538 = vsel %vm474, %v518, 0.0
        %539 = vadd.xlane.f32.xlu0 %v538
        %v540 = vpop.xlane.xlu0 %539
        %v541 = vsel %vm474, %v520, 0.0
        %542 = vadd.xlane.f32.xlu0 %v541
        %v543 = vpop.xlane.xlu0 %542
        %v544 = vsel %vm474, %v522, 0.0
        %545 = vadd.xlane.f32.xlu0 %v544
        %v546 = vpop.xlane.xlu0 %545
        %v547 = vrcp.pop %v525
        %v548 = vmul.f32 %v525, %v547
        %v549 = vsub.f32 1.0, %v548
        %v550 = vmul.f32 %v547, %v549
        %v551 = vadd.f32 %v547, %v550
        %vm552 = vweird.f32 %v525
        %vm553 = vweird.f32 %v547
        %vm554 = vmor %vm552, %vm553
        %v555 = vsel %vm554, %v547, %v551
        %v556 = vand.u32 2147483647, %v525
        %vm557 = vcmp.eq.f32.partialorder %v556, 8.507059e+37
        %v558 = vand.u32 %v525, 2147483648
        %v559 = vor.u32 1.1754944e-38, %v558
        %v560 = vsel %vm557, %v559, %v555
        %v561 = vmul.f32 %v508, %v560
        %v562 = vrcp.pop %v528
        %v563 = vmul.f32 %v528, %v562
        %v564 = vsub.f32 1.0, %v563
        %v565 = vmul.f32 %v562, %v564
        %v566 = vadd.f32 %v562, %v565
        %vm567 = vweird.f32 %v528
        %vm568 = vweird.f32 %v562
        %vm569 = vmor %vm567, %vm568
        %v570 = vsel %vm569, %v562, %v566
        %v571 = vand.u32 2147483647, %v528
        %vm572 = vcmp.eq.f32.partialorder %v571, 8.507059e+37
        %v573 = vand.u32 %v528, 2147483648
        %v574 = vor.u32 1.1754944e-38, %v573
        %v575 = vsel %vm572, %v574, %v570
        %v576 = vmul.f32 %v510, %v575
        %v577 = vrcp.pop %v531
        %v578 = vmul.f32 %v531, %v577
        %v579 = vsub.f32 1.0, %v578
        %v580 = vmul.f32 %v577, %v579
        %v581 = vadd.f32 %v577, %v580
        %vm582 = vweird.f32 %v531
        %vm583 = vweird.f32 %v577
        %vm584 = vmor %vm582, %vm583
        %v585 = vsel %vm584, %v577, %v581
        %v586 = vand.u32 2147483647, %v531
        %vm587 = vcmp.eq.f32.partialorder %v586, 8.507059e+37
        %v588 = vand.u32 %v531, 2147483648
        %v589 = vor.u32 1.1754944e-38, %v588
        %v590 = vsel %vm587, %v589, %v585
        %v591 = vmul.f32 %v512, %v590
        %v592 = vrcp.pop %v534
        %v593 = vmul.f32 %v534, %v592
        %v594 = vsub.f32 1.0, %v593
        %v595 = vmul.f32 %v592, %v594
        %v596 = vadd.f32 %v592, %v595
        %vm597 = vweird.f32 %v534
        %vm598 = vweird.f32 %v592
        %vm599 = vmor %vm597, %vm598
        %v600 = vsel %vm599, %v592, %v596
        %v601 = vand.u32 2147483647, %v534
        %vm602 = vcmp.eq.f32.partialorder %v601, 8.507059e+37
        %v603 = vand.u32 %v534, 2147483648
        %v604 = vor.u32 1.1754944e-38, %v603
        %v605 = vsel %vm602, %v604, %v600
        %v606 = vmul.f32 %v514, %v605
        %v607 = vrcp.pop %v537
        %v608 = vmul.f32 %v537, %v607
        %v609 = vsub.f32 1.0, %v608
        %v610 = vmul.f32 %v607, %v609
        %v611 = vadd.f32 %v607, %v610
        %vm612 = vweird.f32 %v537
        %vm613 = vweird.f32 %v607
        %vm614 = vmor %vm612, %vm613
        %v615 = vsel %vm614, %v607, %v611
        %v616 = vand.u32 2147483647, %v537
        %vm617 = vcmp.eq.f32.partialorder %v616, 8.507059e+37
        %v618 = vand.u32 %v537, 2147483648
        %v619 = vor.u32 1.1754944e-38, %v618
        %v620 = vsel %vm617, %v619, %v615
        %v621 = vmul.f32 %v516, %v620
        %v622 = vrcp.pop %v540
        %v623 = vmul.f32 %v540, %v622
        %v624 = vsub.f32 1.0, %v623
        %v625 = vmul.f32 %v622, %v624
        %v626 = vadd.f32 %v622, %v625
        %vm627 = vweird.f32 %v540
        %vm628 = vweird.f32 %v622
        %vm629 = vmor %vm627, %vm628
        %v630 = vsel %vm629, %v622, %v626
        %v631 = vand.u32 2147483647, %v540
        %vm632 = vcmp.eq.f32.partialorder %v631, 8.507059e+37
        %v633 = vand.u32 %v540, 2147483648
        %v634 = vor.u32 1.1754944e-38, %v633
        %v635 = vsel %vm632, %v634, %v630
        %v636 = vmul.f32 %v518, %v635
        %v637 = vrcp.pop %v543
        %v638 = vmul.f32 %v543, %v637
        %v639 = vsub.f32 1.0, %v638
        %v640 = vmul.f32 %v637, %v639
        %v641 = vadd.f32 %v637, %v640
        %vm642 = vweird.f32 %v543
        %vm643 = vweird.f32 %v637
        %vm644 = vmor %vm642, %vm643
        %v645 = vsel %vm644, %v637, %v641
        %v646 = vand.u32 2147483647, %v543
        %vm647 = vcmp.eq.f32.partialorder %v646, 8.507059e+37
        %v648 = vand.u32 %v543, 2147483648
        %v649 = vor.u32 1.1754944e-38, %v648
        %v650 = vsel %vm647, %v649, %v645
        %v651 = vmul.f32 %v520, %v650
        %v652 = vrcp.pop %v546
        %v653 = vmul.f32 %v546, %v652
        %v654 = vsub.f32 1.0, %v653
        %v655 = vmul.f32 %v652, %v654
        %v656 = vadd.f32 %v652, %v655
        %vm657 = vweird.f32 %v546
        %vm658 = vweird.f32 %v652
        %vm659 = vmor %vm657, %vm658
        %v660 = vsel %vm659, %v652, %v656
        %v661 = vand.u32 2147483647, %v546
        %vm662 = vcmp.eq.f32.partialorder %v661, 8.507059e+37
        %v663 = vand.u32 %v546, 2147483648
        %v664 = vor.u32 1.1754944e-38, %v663
        %v665 = vsel %vm662, %v664, %v660
        %v666 = vmul.f32 %v522, %v665
        %667 = vst.msk [vmem:[%s285] sm:$0xff] %vm474, %v561
        %668 = vst.msk [vmem:[%s285 + $0x8] sm:$0xff] %vm474, %v576
        %669 = vst.msk [vmem:[%s285 + $0x10] sm:$0xff] %vm474, %v591
        %670 = vst.msk [vmem:[%s285 + $0x18] sm:$0xff] %vm474, %v606
        %671 = vst.msk [vmem:[%s285 + $0x20] sm:$0xff] %vm474, %v621
        %672 = vst.msk [vmem:[%s285 + $0x28] sm:$0xff] %vm474, %v636
        %673 = vst.msk [vmem:[%s285 + $0x30] sm:$0xff] %vm474, %v651
        %674 = vst.msk [vmem:[%s285 + $0x38] sm:$0xff] %vm474, %v666
        %v676 = vsel %vm474, %v561, 0
        %v679 = vsel %vm474, %v576, 0
        %681 = vmatpush.msra.mxu0 0.0
        %682 = vmatpush.msra.mxu0 0.0
        %683 = vmatpush.msra.mxu0 0.0
        %684 = vmatpush.msra.mxu0 0.0
        %685 = vmatpush.msra.mxu0 0.0
        %686 = vmatpush.msra.mxu0 0.0
        %687 = vmatpush.msra.mxu0 0.0
        %688 = vmatpush.msra.mxu0 0.0
        %689 = vmatpush.msra.mxu0 0.0
        %690 = vmatpush.msra.mxu0 0.0
        %691 = vmatpush.msra.mxu0 0.0
        %692 = vmatpush.msra.mxu0 0.0
        %693 = vmatpush.msra.mxu0 0.0
        %694 = vmatpush.msra.mxu0 0.0
        %695 = vmatpush.msra.mxu0 %v326
        %696 = vmatpush.msra.mxu0 %v325
        %697 = vmatmul.f32.gmra.mxu0 %v676
        %v698 = vpop.f32.mrf.mxu0
        %v699 = vadd.f32 0.0, %v698
        %700 = vmatmul.f32.gmra.mxu0 %v679
        %v701 = vpop.f32.mrf.mxu0
        %v702 = vadd.f32 0.0, %v701
        %703 = vdwg.mxu0
        %v705 = vsel %vm474, %v591, 0
        %v708 = vsel %vm474, %v606, 0
        %710 = vmatpush.msra.mxu0 0.0
        %711 = vmatpush.msra.mxu0 0.0
        %712 = vmatpush.msra.mxu0 0.0
        %713 = vmatpush.msra.mxu0 0.0
        %714 = vmatpush.msra.mxu0 0.0
        %715 = vmatpush.msra.mxu0 0.0
        %716 = vmatpush.msra.mxu0 0.0
        %717 = vmatpush.msra.mxu0 0.0
        %718 = vmatpush.msra.mxu0 0.0
        %719 = vmatpush.msra.mxu0 0.0
        %720 = vmatpush.msra.mxu0 0.0
        %721 = vmatpush.msra.mxu0 0.0
        %722 = vmatpush.msra.mxu0 0.0
        %723 = vmatpush.msra.mxu0 0.0
        %724 = vmatpush.msra.mxu0 %v328
        %725 = vmatpush.msra.mxu0 %v327
        %726 = vmatmul.f32.gmra.mxu0 %v705
        %v727 = vpop.f32.mrf.mxu0
        %v728 = vadd.f32 0.0, %v727
        %729 = vmatmul.f32.gmra.mxu0 %v708
        %v730 = vpop.f32.mrf.mxu0
        %v731 = vadd.f32 0.0, %v730
        %732 = vdwg.mxu0
        %v734 = vsel %vm474, %v621, 0
        %v737 = vsel %vm474, %v636, 0
        %739 = vmatpush.msra.mxu0 0.0
        %740 = vmatpush.msra.mxu0 0.0
        %741 = vmatpush.msra.mxu0 0.0
        %742 = vmatpush.msra.mxu0 0.0
        %743 = vmatpush.msra.mxu0 0.0
        %744 = vmatpush.msra.mxu0 0.0
        %745 = vmatpush.msra.mxu0 0.0
        %746 = vmatpush.msra.mxu0 0.0
        %747 = vmatpush.msra.mxu0 0.0
        %748 = vmatpush.msra.mxu0 0.0
        %749 = vmatpush.msra.mxu0 0.0
        %750 = vmatpush.msra.mxu0 0.0
        %751 = vmatpush.msra.mxu0 0.0
        %752 = vmatpush.msra.mxu0 0.0
        %753 = vmatpush.msra.mxu0 %v330
        %754 = vmatpush.msra.mxu0 %v329
        %755 = vmatmul.f32.gmra.mxu0 %v734
        %v756 = vpop.f32.mrf.mxu0
        %v757 = vadd.f32 0.0, %v756
        %758 = vmatmul.f32.gmra.mxu0 %v737
        %v759 = vpop.f32.mrf.mxu0
        %v760 = vadd.f32 0.0, %v759
        %761 = vdwg.mxu0
        %v763 = vsel %vm474, %v651, 0
        %v766 = vsel %vm474, %v666, 0
        %768 = vmatpush.msra.mxu0 0.0
        %769 = vmatpush.msra.mxu0 0.0
        %770 = vmatpush.msra.mxu0 0.0
        %771 = vmatpush.msra.mxu0 0.0
        %772 = vmatpush.msra.mxu0 0.0
        %773 = vmatpush.msra.mxu0 0.0
        %774 = vmatpush.msra.mxu0 0.0
        %775 = vmatpush.msra.mxu0 0.0
        %776 = vmatpush.msra.mxu0 0.0
        %777 = vmatpush.msra.mxu0 0.0
        %778 = vmatpush.msra.mxu0 0.0
        %779 = vmatpush.msra.mxu0 0.0
        %780 = vmatpush.msra.mxu0 0.0
        %781 = vmatpush.msra.mxu0 0.0
        %782 = vmatpush.msra.mxu0 %v332
        %783 = vmatpush.msra.mxu0 %v331
        %784 = vmatmul.f32.gmra.mxu0 %v763
        %v785 = vpop.f32.mrf.mxu0
        %v786 = vadd.f32 0.0, %v785
        %787 = vmatmul.f32.gmra.mxu0 %v766
        %v788 = vpop.f32.mrf.mxu0
        %v789 = vadd.f32 0.0, %v788
        %790 = vdwg.mxu0
        %v791 = vld [vmem:[%s3] sm:$0xff]
        %v792 = vld [vmem:[%s3 + $0x8] sm:$0xff]
        %v793 = vld [vmem:[%s3 + $0x10] sm:$0xff]
        %v794 = vld [vmem:[%s3 + $0x18] sm:$0xff]
        %v796 = vsel %vm333, %v699, 0
        %v799 = vsel %vm333, %v702, 0
        %801 = vmatpush.msra.mxu0 0.0
        %802 = vmatpush.msra.mxu0 0.0
        %803 = vmatpush.msra.mxu0 0.0
        %804 = vmatpush.msra.mxu0 0.0
        %805 = vmatpush.msra.mxu0 0.0
        %806 = vmatpush.msra.mxu0 0.0
        %807 = vmatpush.msra.mxu0 0.0
        %808 = vmatpush.msra.mxu0 0.0
        %809 = vmatpush.msra.mxu0 0.0
        %810 = vmatpush.msra.mxu0 0.0
        %811 = vmatpush.msra.mxu0 0.0
        %812 = vmatpush.msra.mxu0 0.0
        %813 = vmatpush.msra.mxu0 0.0
        %814 = vmatpush.msra.mxu0 0.0
        %815 = vmatpush.msra.mxu0 0.0
        %816 = vmatpush.msra.mxu0 %v791
        %817 = vmatmul.f32.gmra.mxu0 %v796
        %v818 = vpop.f32.mrf.mxu0
        %v819 = vadd.f32 0.0, %v818
        %820 = vmatmul.f32.gmra.mxu0 %v799
        %v821 = vpop.f32.mrf.mxu0
        %v822 = vadd.f32 0.0, %v821
        %823 = vdwg.mxu0
        %v825 = vsel %vm333, %v728, 0
        %v828 = vsel %vm333, %v731, 0
        %830 = vmatpush.msra.mxu0 0.0
        %831 = vmatpush.msra.mxu0 0.0
        %832 = vmatpush.msra.mxu0 0.0
        %833 = vmatpush.msra.mxu0 0.0
        %834 = vmatpush.msra.mxu0 0.0
        %835 = vmatpush.msra.mxu0 0.0
        %836 = vmatpush.msra.mxu0 0.0
        %837 = vmatpush.msra.mxu0 0.0
        %838 = vmatpush.msra.mxu0 0.0
        %839 = vmatpush.msra.mxu0 0.0
        %840 = vmatpush.msra.mxu0 0.0
        %841 = vmatpush.msra.mxu0 0.0
        %842 = vmatpush.msra.mxu0 0.0
        %843 = vmatpush.msra.mxu0 0.0
        %844 = vmatpush.msra.mxu0 0.0
        %845 = vmatpush.msra.mxu0 %v792
        %846 = vmatmul.f32.gmra.mxu0 %v825
        %v847 = vpop.f32.mrf.mxu0
        %v848 = vadd.f32 0.0, %v847
        %849 = vmatmul.f32.gmra.mxu0 %v828
        %v850 = vpop.f32.mrf.mxu0
        %v851 = vadd.f32 0.0, %v850
        %852 = vdwg.mxu0
        %v854 = vsel %vm333, %v757, 0
        %v857 = vsel %vm333, %v760, 0
        %859 = vmatpush.msra.mxu0 0.0
        %860 = vmatpush.msra.mxu0 0.0
        %861 = vmatpush.msra.mxu0 0.0
        %862 = vmatpush.msra.mxu0 0.0
        %863 = vmatpush.msra.mxu0 0.0
        %864 = vmatpush.msra.mxu0 0.0
        %865 = vmatpush.msra.mxu0 0.0
        %866 = vmatpush.msra.mxu0 0.0
        %867 = vmatpush.msra.mxu0 0.0
        %868 = vmatpush.msra.mxu0 0.0
        %869 = vmatpush.msra.mxu0 0.0
        %870 = vmatpush.msra.mxu0 0.0
        %871 = vmatpush.msra.mxu0 0.0
        %872 = vmatpush.msra.mxu0 0.0
        %873 = vmatpush.msra.mxu0 0.0
        %874 = vmatpush.msra.mxu0 %v793
        %875 = vmatmul.f32.gmra.mxu0 %v854
        %v876 = vpop.f32.mrf.mxu0
        %v877 = vadd.f32 0.0, %v876
        %878 = vmatmul.f32.gmra.mxu0 %v857
        %v879 = vpop.f32.mrf.mxu0
        %v880 = vadd.f32 0.0, %v879
        %881 = vdwg.mxu0
        %v883 = vsel %vm333, %v786, 0
        %v886 = vsel %vm333, %v789, 0
        %888 = vmatpush.msra.mxu0 0.0
        %889 = vmatpush.msra.mxu0 0.0
        %890 = vmatpush.msra.mxu0 0.0
        %891 = vmatpush.msra.mxu0 0.0
        %892 = vmatpush.msra.mxu0 0.0
        %893 = vmatpush.msra.mxu0 0.0
        %894 = vmatpush.msra.mxu0 0.0
        %895 = vmatpush.msra.mxu0 0.0
        %896 = vmatpush.msra.mxu0 0.0
        %897 = vmatpush.msra.mxu0 0.0
        %898 = vmatpush.msra.mxu0 0.0
        %899 = vmatpush.msra.mxu0 0.0
        %900 = vmatpush.msra.mxu0 0.0
        %901 = vmatpush.msra.mxu0 0.0
        %902 = vmatpush.msra.mxu0 0.0
        %903 = vmatpush.msra.mxu0 %v794
        %904 = vmatmul.f32.gmra.mxu0 %v883
        %v905 = vpop.f32.mrf.mxu0
        %v906 = vadd.f32 0.0, %v905
        %907 = vmatmul.f32.gmra.mxu0 %v886
        %v908 = vpop.f32.mrf.mxu0
        %v909 = vadd.f32 0.0, %v908
        %910 = vdwg.mxu0
        %v911 = vadd.f32 %v819, %v848
        %v912 = vadd.f32 %v822, %v851
        %v913 = vadd.f32 %v911, %v877
        %v914 = vadd.f32 %v912, %v880
        %v915 = vadd.f32 %v913, %v906
        %v916 = vadd.f32 %v914, %v909
        %v917 = vld [vmem:[%s4] sm:$0x1]
        %v919 = vperm.slane %v917, 0
        %v921 = vadd.f32 %v915, %v919
        %v922 = vadd.f32 %v916, %v919
        %923 = vst [vmem:[%s278] sm:$0xff] %v921
        %924 = vst [vmem:[%s278 + $0x8] sm:$0xff] %v922
        %s925 = sand.u32 %s152, 1
        %s926 = scalar_lea.sflag [#allocation3], %s925
        %s927 = sand.u32 %s152, 1
        %s928 = smul.addr %s927, 16
        %s929 = scalar_lea.vmem [#allocation2], %s928
        %s930 = sand.u32 %s178, 1
        %s931 = scalar_lea.sflag [#allocation5], %s930
        %s932 = sand.u32 %s178, 1
        %s933 = smul.addr %s932, 64
        %s934 = scalar_lea.vmem [#allocation4], %s933
        // Predicated region
        $region41: #{path_attention_forward.5} parent=39 // pred_check
          %p935 = pneg %p162
        $region42: #{path_attention_forward.5} parent=39 // pred_check_branch
          %937 = sbr.rel (%p935) target = $region44
        $region43: #{path_attention_forward.5} parent=39 // pred_region
          %939 = vsyncadd %s926, 0
          %s940 = smul.addr %s24, 2
          %s941 = smul.addr %s940, 8
          %s942 = scalar_lea.hbm %s5, %s941
          %s943 = sshll.u32 %s929, 4
          %s944 = int_to_ptr.vmem [resolvable:$true] %s943
          %s945 = sshll.u32 %s942, 4
          %s946 = int_to_ptr.hbm [resolvable:$true] %s945
          %951 = dma.vmem_to_hbm [thread:$0]  %s944, 256, %s946, %s926, 128, 128, 8
        $region44: #{path_attention_forward.5} parent=39 // pred_fallthru
          _
        // Predicated region
        $region45: #{path_attention_forward.5} parent=39 // pred_check
          %p952 = pneg %p188
        $region46: #{path_attention_forward.5} parent=39 // pred_check_branch
          %954 = sbr.rel (%p952) target = $region48
        $region47: #{path_attention_forward.5} parent=39 // pred_region
          %956 = vsyncadd %s931, 0
          %s957 = smul.addr %s24, 8
          %s958 = smul.addr %s957, 8
          %s959 = scalar_lea.hbm %s6, %s958
          %s960 = sshll.u32 %s934, 4
          %s961 = int_to_ptr.vmem [resolvable:$true] %s960
          %s962 = sshll.u32 %s959, 4
          %s963 = int_to_ptr.hbm [resolvable:$true] %s962
          %968 = dma.vmem_to_hbm [thread:$0]  %s961, 1024, %s963, %s931, 128, 128, 8
        $region48: #{path_attention_forward.5} parent=39 // pred_fallthru
          _
      $region40: #{path_attention_forward.5} parent=5 // pred_fallthru
        _
      %p969 = scmp.le.s32.totalorder 2, %s19
      // Predicated region
      $region49: #{path_attention_forward.5} parent=5 // pred_check
        %p970 = pneg %p969
      $region50: #{path_attention_forward.5} parent=5 // pred_check_branch
        %972 = sbr.rel (%p970) target = $region52
      $region51: #{path_attention_forward.5} parent=5 // pred_region
        %s973 = ssub.s32 %s19, 2
        // Predicated region
        $region53: #{path_attention_forward.5} parent=51 // pred_check
          %p974 = pneg %p168
        $region54: #{path_attention_forward.5} parent=51 // pred_check_branch
          %976 = sbr.rel (%p974) target = $region56
        $region55: #{path_attention_forward.5} parent=51 // pred_region
          %s977 = sand.u32 %s153, 1
          %s978 = scalar_lea.sflag [#allocation3], %s977
          %s979 = sand.u32 %s153, 1
          %s980 = smul.addr %s979, 16
          %s981 = scalar_lea.vmem [#allocation2], %s980
          %983 = dma.done %s978, 256
        $region56: #{path_attention_forward.5} parent=51 // pred_fallthru
          _
        // Predicated region
        $region57: #{path_attention_forward.5} parent=51 // pred_check
          %p984 = pneg %p194
        $region58: #{path_attention_forward.5} parent=51 // pred_check_branch
          %986 = sbr.rel (%p984) target = $region60
        $region59: #{path_attention_forward.5} parent=51 // pred_region
          %s987 = sand.u32 %s179, 1
          %s988 = scalar_lea.sflag [#allocation5], %s987
          %s989 = sand.u32 %s179, 1
          %s990 = smul.addr %s989, 64
          %s991 = scalar_lea.vmem [#allocation4], %s990
          %993 = dma.done %s988, 1024
        $region60: #{path_attention_forward.5} parent=51 // pred_fallthru
          _
      $region52: #{path_attention_forward.5} parent=5 // pred_fallthru
        _
    $region6: #{path_attention_forward.5} parent=1 // loop_footer
      %s23 = sadd.s32 1, %s19
    $region7: #{path_attention_forward.5} parent=1 // loop_footer_branch
      %18 = sbr.rel target = $region3
    $region8: #{path_attention_forward.5} parent=1 // loop_exit
      _
    %994 = vsyncpa [#allocation3], 1
    %s995 = scalar_lea.sflag [#allocation3], 1
    %996 = vsyncpa %s995, 1
    %997 = vsyncpa [#allocation5], 1
    %s998 = scalar_lea.sflag [#allocation5], 1
    %999 = vsyncpa %s998, 1

</llo_original>
